<compile_context>
chip_gen: v7x
topology: tpu7x:2x2x1
jax: 0.10.0
libtpu: 0.0.40
codegen_flags: <defaults>
</compile_context>

<pallas_src>
import functools
import numpy as np
import jax
import jax.numpy as jnp
from jax.experimental import pallas as pl
from jax.experimental.pallas import tpu as pltpu


# ----------------------------- Pallas kernel --------------------------------
def _fuse_kernel(ego_ref, neigh_ref,
                 w1a_ref, w1b_ref, b1_ref,
                 w2_ref, b2_ref,
                 w3_ref, b3_ref,
                 w4_ref, b4_ref,
                 out_ref, *, n_agents):
    """DiscoNet pixel-weighted fusion for one (ego agent, pixel tile) grid cell.

    ego_ref   : (C, TP)       bf16  ego feature tile (pixels on lanes)
    neigh_ref : (N, C, TP)    bf16  warped neighbor tiles (agent-major leading axis)
    w1a/w1b   : (32, C)       bf16  conv1_1 (+BN folded) split into ego / neighbor
                                    halves of the channel concat
    w2/w3     : (16,32)/(8,16) bf16 conv1_2 / conv1_3 (+BN folded)
    b1/b2/b3  : (32,1)/(16,1)/(8,1) f32 lane-broadcast biases
    w4_ref    : (8, 1) f32    conv1_4 weight as a lane-broadcast column (VPU path)
    b4_ref    : (1,)   f32    SMEM scalar
    out_ref   : (C, TP)       fused output tile
    """
    f32 = jnp.float32
    bf16 = jnp.bfloat16

    ego = ego_ref[...]                                               # (C, TP)

    # ego half of conv1_1: hoisted, computed once per tile
    ego_part = jnp.dot(w1a_ref[...], ego, preferred_element_type=f32) + b1_ref[...]

    w4col = w4_ref[...]                                              # (8, 1) f32
    b4 = b4_ref[0]

    # --- per-agent weight branch (unrolled); keeps only a (1, TP) logit alive ---
    logits = []
    for j in range(n_agents):
        nj = neigh_ref[j]                                            # (C, TP) bf16
        h = jnp.dot(w1b_ref[...], nj, preferred_element_type=f32) + ego_part
        h = jnp.maximum(h, 0.0).astype(bf16)                         # (32, TP)
        h = jnp.dot(w2_ref[...], h, preferred_element_type=f32) + b2_ref[...]
        h = jnp.maximum(h, 0.0).astype(bf16)                         # (16, TP)
        h = jnp.dot(w3_ref[...], h, preferred_element_type=f32) + b3_ref[...]
        h = jnp.maximum(h, 0.0)                                      # (8, TP) f32
        # conv1_4: 1-row output -> VPU mul + sublane reduce instead of MXU
        logit = jnp.sum(w4col * h, axis=0, keepdims=True) + b4       # (1, TP)
        logits.append(jnp.maximum(logit, 0.0))

    # --- per-pixel softmax across agents (max-subtracted for overflow safety) ---
    m = logits[0]
    for j in range(1, n_agents):
        m = jnp.maximum(m, logits[j])
    exps = [jnp.exp(l - m) for l in logits]
    sum_e = exps[0]
    for j in range(1, n_agents):
        sum_e = sum_e + exps[j]
    inv = pl.reciprocal(sum_e, approx=False)   # exact, to match reference division

    # --- agent-weighted sum of warped neighbor features ---
    acc = (exps[0] * inv) * neigh_ref[0].astype(f32)
    for j in range(1, n_agents):
        acc = acc + (exps[j] * inv) * neigh_ref[j].astype(f32)
    out_ref[...] = acc.astype(out_ref.dtype)


def _pixel_weighted_fusion(ego_cp, neigh, params, tile_p, out_dtype):
    """ego_cp: (Ne, C, Pp) bf16; neigh: (Ne, N, C, Pp) bf16 -> (Ne, C, Pp) out_dtype."""
    Ne, C, Pp = ego_cp.shape
    n_agents = neigh.shape[1]
    nt = Pp // tile_p
    w1a, w1b, b1, w2, b2, w3, b3, w4col, b4 = params

    kernel = functools.partial(_fuse_kernel, n_agents=n_agents)

    def _const(arr):   # tiny weight/bias block, same full block every grid step
        return pl.BlockSpec(arr.shape, lambda e, p: (0, 0))

    return pl.pallas_call(
        kernel,
        out_shape=jax.ShapeDtypeStruct((Ne, C, Pp), out_dtype),
        grid_spec=pltpu.PrefetchScalarGridSpec(
            num_scalar_prefetch=0,
            grid=(Ne, nt),                                   # ego axis x pixel-tile axis
            in_specs=[
                pl.BlockSpec((None, C, tile_p), lambda e, p: (e, 0, p)),
                pl.BlockSpec((None, n_agents, C, tile_p), lambda e, p: (e, 0, 0, p)),
                _const(w1a), _const(w1b), _const(b1),
                _const(w2), _const(b2),
                _const(w3), _const(b3),
                _const(w4col),
                pl.BlockSpec(memory_space=pltpu.MemorySpace.SMEM),   # b4 scalar
            ],
            out_specs=pl.BlockSpec((None, C, tile_p), lambda e, p: (e, 0, p)),
        ),
        compiler_params=pltpu.CompilerParams(
            dimension_semantics=("parallel", "parallel")),
    )(ego_cp, neigh, w1a, w1b, b1, w2, b2, w3, b3, w4col, b4)


def _pick_tile_p(P_padded, n_agents, C, out_itemsize, vmem_budget=16 << 20):
    """VMEM-budget-derived pixel tile (multiple of 128 dividing the padded P)."""
    # double-buffered per-pixel bytes: ego bf16 + N neighbor bf16 + output
    per_px = 2 * (C * 2 + n_agents * C * 2 + C * out_itemsize)
    cap = min(1024, vmem_budget // per_px)
    if P_padded >= 256:          # keep >=2 pixel tiles so both v7x cores get work
        cap = min(cap, P_padded // 2)
    cap = max(128, (cap // 128) * 128)
    t = cap
    while t > 128 and P_padded % t != 0:
        t -= 128
    return t


# ------------------------ transformation glue (plain JAX) -------------------
def get_discretized_transformation_matrix(matrix, discrete_ratio, downsample_rate):
    # matrix: (B*L, L, 4, 4) -> (B*L, L, 2, 3); translation scaled to feature px.
    rows = matrix[:, :, 0:2, :]                      # (B*L, L, 2, 4)
    return jnp.stack(
        [rows[..., 0], rows[..., 1],
         rows[..., 3] / (discrete_ratio * downsample_rate)], axis=-1)


def _normal_transform_pixel(H, W):
    # pixel coords -> normalized [-1, 1], align_corners=True
    return jnp.array([[2.0 / (W - 1), 0.0, -1.0],
                      [0.0, 2.0 / (H - 1), -1.0],
                      [0.0, 0.0, 1.0]], jnp.float32)


def get_transformation_matrix(M, dsize):
    # M: (N, 2, 3) pixel-space affine -> theta (N, 2, 3) for affine_grid.
    H, W = dsize
    N = M.shape[0]
    bottom = jnp.tile(jnp.array([[[0.0, 0.0, 1.0]]], jnp.float32), (N, 1, 1))
    hom = jnp.concatenate([M, bottom], axis=1)       # (N, 3, 3)
    T = _normal_transform_pixel(H, W)
    theta = jnp.einsum('ij,njk,kl->nil', T, hom, jnp.linalg.inv(T))
    return theta[:, :2, :]


def warp_affine(src, theta, dsize):
    # TODO(synk): bilinear grid_sample is a data-dependent gather with no clean
    # BlockSpec expression; kept in plain JAX (glue) rather than faked in Pallas.
    N, C, H, W = src.shape
    Ho, Wo = dsize
    xs = jnp.linspace(-1.0, 1.0, Wo)
    ys = jnp.linspace(-1.0, 1.0, Ho)
    gy, gx = jnp.meshgrid(ys, xs, indexing='ij')
    base = jnp.stack([gx, gy, jnp.ones_like(gx)], axis=-1)        # (Ho, Wo, 3)
    grid = jnp.einsum('hwk,nok->nhwo', base, theta)               # (N, Ho, Wo, 2)
    px = (grid[..., 0] + 1.0) * (W - 1) / 2.0
    py = (grid[..., 1] + 1.0) * (H - 1) / 2.0
    x0 = jnp.floor(px)
    y0 = jnp.floor(py)
    x1, y1 = x0 + 1.0, y0 + 1.0
    wx1, wy1 = px - x0, py - y0
    wx0, wy0 = 1.0 - wx1, 1.0 - wy1
    flat = src.reshape(N, C, H * W)

    def gather(xi, yi):
        valid = ((xi >= 0) & (xi <= W - 1) & (yi >= 0) & (yi <= H - 1))
        xc = jnp.clip(xi, 0, W - 1).astype(jnp.int32)
        yc = jnp.clip(yi, 0, H - 1).astype(jnp.int32)
        idx = (yc * W + xc).reshape(N, 1, Ho * Wo)
        idx = jnp.broadcast_to(idx, (N, C, Ho * Wo))
        g = jnp.take_along_axis(flat, idx, axis=2).reshape(N, C, Ho, Wo)
        return g * valid.astype(src.dtype)[:, None, :, :]

    out = (gather(x0, y0) * (wx0 * wy0)[:, None]
           + gather(x1, y0) * (wx1 * wy0)[:, None]
           + gather(x0, y1) * (wx0 * wy1)[:, None]
           + gather(x1, y1) * (wx1 * wy1)[:, None])
    return out


# ----------------------------- parameters -----------------------------------
def _make_conv_bn(key, cin, cout, eps=1e-5):
    kw, kb, kg, kbe, km, kv = jax.random.split(key, 6)
    Wmat = jax.random.normal(kw, (cout, cin), jnp.float32) / np.sqrt(cin)
    b = 0.05 * jax.random.normal(kb, (cout,), jnp.float32)
    gamma = 1.0 + 0.1 * jax.random.normal(kg, (cout,), jnp.float32)
    beta = 0.05 * jax.random.normal(kbe, (cout,), jnp.float32)
    mean = 0.05 * jax.random.normal(km, (cout,), jnp.float32)
    var = 0.5 + jax.random.uniform(kv, (cout,), jnp.float32)
    scale = gamma / jnp.sqrt(var + eps)               # fold BN (eval mode)
    W_folded = (Wmat * scale[:, None]).astype(jnp.bfloat16)         # (out, in) bf16
    b_folded = ((b - mean) * scale + beta).reshape(cout, 1)         # (out, 1) f32
    return W_folded, b_folded


def init_params(key, channel=32):
    k1, k2, k3, k4a, k4b = jax.random.split(key, 5)
    w1, b1 = _make_conv_bn(k1, 2 * channel, 32)       # conv1_1 + bn1_1
    w2, b2 = _make_conv_bn(k2, 32, 16)                # conv1_2 + bn1_2
    w3, b3 = _make_conv_bn(k3, 16, 8)                 # conv1_3 + bn1_3
    # conv1_4: kept f32 as an (8, 1) lane-broadcast column (VPU path in-kernel)
    w4col = (jax.random.normal(k4a, (8, 1), jnp.float32) / np.sqrt(8))
    b4 = 0.05 * jax.random.normal(k4b, (1,), jnp.float32)
    # split conv1_1 into the ego half and the neighbor half of the channel concat
    w1a, w1b = w1[:, :channel], w1[:, channel:]
    return (w1a, w1b, b1, w2, b2, w3, b3, w4col, b4)


# ------------------------------- forward ------------------------------------
@functools.partial(jax.jit, static_argnames=("H", "W", "tile_p"))
def _batch_forward(feat_b, t_matrix_b, params, *, H, W, tile_p):
    """One batch: all egos fused into a single pallas_call."""
    N, C = feat_b.shape[0], feat_b.shape[1]
    P = H * W
    Pp = ((P + 127) // 128) * 128                     # pad pixels to a 128 multiple
    pad = Pp - P

    # thetas for (ego i, agent j): reference uses t_matrix[j, i] for neighbor j of ego i
    t_all = jnp.transpose(t_matrix_b, (1, 0, 2, 3)).reshape(N * N, 2, 3)
    theta = get_transformation_matrix(t_all, (H, W))
    src = jnp.broadcast_to(feat_b[None], (N, N, C, H, W)).reshape(N * N, C, H, W)
    warped = warp_affine(src, theta, (H, W))

    # layout-preserving: kernel consumes (Ne, N, C, P) directly, no pack transpose
    neigh = warped.astype(jnp.bfloat16).reshape(N, N, C, P)
    ego = feat_b.reshape(N, C, P).astype(jnp.bfloat16)
    if pad:
        neigh = jnp.pad(neigh, ((0, 0), (0, 0), (0, 0), (0, pad)))
        ego = jnp.pad(ego, ((0, 0), (0, 0), (0, pad)))

    fused = _pixel_weighted_fusion(ego, neigh, params, tile_p, jnp.float32)
    return fused[:, :, :P].reshape(N, C, H, W)


def disconet_fusion_forward(x, record_len, pairwise_t_matrix, params,
                            discrete_ratio, downsample_rate):
    _, C, H, W = x.shape
    B, L = pairwise_t_matrix.shape[:2]
    P = H * W
    Pp = ((P + 127) // 128) * 128

    cum = np.concatenate([[0], np.cumsum(np.asarray(record_len))])
    tm = get_discretized_transformation_matrix(
        pairwise_t_matrix.reshape(-1, L, 4, 4),
        discrete_ratio, downsample_rate).reshape(B, L, L, 2, 3)

    out_last = None
    for b in range(B):
        N = int(record_len[b])
        feat_b = x[int(cum[b]):int(cum[b + 1])]                     # (N, C, H, W)
        t_matrix = tm[b, :N, :N]                                    # (N, N, 2, 3)
        tile_p = _pick_tile_p(Pp, N, C, out_itemsize=4)
        # NOTE: reference code overwrites the result every batch -> returns last batch only.
        out_last = _batch_forward(feat_b, t_matrix, params, H=H, W=W, tile_p=tile_p)
    return out_last


# --------------------------------- main --------------------------------------
if __name__ == "__main__":
    C, H, W = 32, 16, 16
    B, L = 2, 5
    record_len = [2, 3]
    discrete_ratio, downsample_rate = 0.4, 2

    key = jax.random.PRNGKey(0)
    kx, kt, kp = jax.random.split(key, 3)

    x = jax.random.normal(kx, (sum(record_len), C, H, W), jnp.float32)

    # pairwise_t_matrix: identity 4x4 with small random x/y translations (meters)
    pmat = jnp.tile(jnp.eye(4, dtype=jnp.float32), (B, L, L, 1, 1))
    trans = jax.random.uniform(kt, (B, L, L, 2), minval=-1.5, maxval=1.5)
    pmat = pmat.at[..., 0, 3].set(trans[..., 0])
    pmat = pmat.at[..., 1, 3].set(trans[..., 1])

    params = init_params(kp, channel=C)

    out = disconet_fusion_forward(x, record_len, pmat, params,
                                  discrete_ratio, downsample_rate)
    out = jax.block_until_ready(out)
    assert out.shape == (record_len[-1], C, H, W), out.shape
    assert bool(jnp.all(jnp.isfinite(out)))
    print("KERNEL_OK")
</pallas_src>

<mosaic_0001>
module attributes {stable_mosaic.version = 11 : i64} {
  func.func private @main(%arg0: i32) attributes {dimension_semantics = [#tpu.dimension_semantics<core_parallel>], iteration_bounds = array<i64: 2>, tpu.core_type = #tpu.core_type<sc_scalar_subcore>, window_params = []} {
    return
  }
}

module attributes {stable_mosaic.version = 11 : i64} {
  func.func private @main(%arg0: i32) attributes {dimension_semantics = [#tpu.dimension_semantics<core_parallel>], iteration_bounds = array<i64: 2>, tpu.core_type = #tpu.core_type<sc_scalar_subcore>, window_params = []} {
    return
  }
}

module attributes {stable_mosaic.version = 11 : i64} {
  func.func @_fuse_kernel(%arg0: i32, %arg1: i32, %arg2: memref<1x32x128xbf16, #tpu.memory_space<vmem>>, %arg3: memref<1x2x32x128xbf16, #tpu.memory_space<vmem>>, %arg4: memref<32x32xbf16, #tpu.memory_space<vmem>>, %arg5: memref<32x32xbf16, #tpu.memory_space<vmem>>, %arg6: memref<32x1xf32, #tpu.memory_space<vmem>>, %arg7: memref<16x32xbf16, #tpu.memory_space<vmem>>, %arg8: memref<16x1xf32, #tpu.memory_space<vmem>>, %arg9: memref<8x16xbf16, #tpu.memory_space<vmem>>, %arg10: memref<8x1xf32, #tpu.memory_space<vmem>>, %arg11: memref<8x1xf32, #tpu.memory_space<vmem>>, %arg12: memref<1xf32, #tpu.memory_space<smem>>, %arg13: memref<1x32x128xf32, #tpu.memory_space<vmem>>) attributes {dimension_semantics = [#tpu.dimension_semantics<parallel>, #tpu.dimension_semantics<parallel>], iteration_bounds = array<i64: 2, 2>, scalar_prefetch = 0 : i64, scratch_operands = 0 : i64, tpu.core_type = #tpu.core_type<tc>, window_params = [{transform_indices = @transform_0, window_bounds = array<i64: 1, 32, 128>}, {transform_indices = @transform_1, window_bounds = array<i64: 1, 2, 32, 128>}, {pipeline_mode = #tpu.pipeline_mode<synchronous>, transform_indices = @transform_2, window_bounds = array<i64: 32, 32>}, {pipeline_mode = #tpu.pipeline_mode<synchronous>, transform_indices = @transform_3, window_bounds = array<i64: 32, 32>}, {pipeline_mode = #tpu.pipeline_mode<synchronous>, transform_indices = @transform_4, window_bounds = array<i64: 32, 1>}, {pipeline_mode = #tpu.pipeline_mode<synchronous>, transform_indices = @transform_5, window_bounds = array<i64: 16, 32>}, {pipeline_mode = #tpu.pipeline_mode<synchronous>, transform_indices = @transform_6, window_bounds = array<i64: 16, 1>}, {pipeline_mode = #tpu.pipeline_mode<synchronous>, transform_indices = @transform_7, window_bounds = array<i64: 8, 16>}, {pipeline_mode = #tpu.pipeline_mode<synchronous>, transform_indices = @transform_8, window_bounds = array<i64: 8, 1>}, {pipeline_mode = #tpu.pipeline_mode<synchronous>, transform_indices = @transform_9, window_bounds = array<i64: 8, 1>}, {transform_indices = @transform_10, window_bounds = array<i64: 1>}, {transform_indices = @transform_11, window_bounds = array<i64: 1, 32, 128>}]} {
    %c0 = arith.constant 0 : index
    %c0_0 = arith.constant 0 : index
    %c0_1 = arith.constant 0 : index
    %0 = vector.load %arg2[%c0, %c0_0, %c0_1] : memref<1x32x128xbf16, #tpu.memory_space<vmem>>, vector<1x32x128xbf16>
    %1 = vector.shape_cast %0 : vector<1x32x128xbf16> to vector<32x128xbf16>
    %c0_2 = arith.constant 0 : index
    %c0_3 = arith.constant 0 : index
    %2 = vector.load %arg4[%c0_2, %c0_3] : memref<32x32xbf16, #tpu.memory_space<vmem>>, vector<32x32xbf16>
    %cst = arith.constant dense<0.000000e+00> : vector<32x128xf32>
    %3 = tpu.matmul %2, %1, %cst {dimension_numbers = #tpu.dot_dimension_numbers<[1], [0], [0], [1], [0, 0, 1, 1], [], []>} : vector<32x32xbf16>, vector<32x128xbf16>, vector<32x128xf32> -> vector<32x128xf32>
    %c0_4 = arith.constant 0 : index
    %c0_5 = arith.constant 0 : index
    %4 = vector.load %arg6[%c0_4, %c0_5] : memref<32x1xf32, #tpu.memory_space<vmem>>, vector<32x1xf32>
    %5 = vector.broadcast %4 : vector<32x1xf32> to vector<32x128xf32>
    %6 = arith.addf %3, %5 : vector<32x128xf32>
    %c0_6 = arith.constant 0 : index
    %c0_7 = arith.constant 0 : index
    %7 = vector.load %arg11[%c0_6, %c0_7] : memref<8x1xf32, #tpu.memory_space<vmem>>, vector<8x1xf32>
    %c0_8 = arith.constant 0 : index
    %8 = memref.load %arg12[%c0_8] : memref<1xf32, #tpu.memory_space<smem>>
    %c0_9 = arith.constant 0 : index
    %c0_10 = arith.constant 0 : index
    %c0_11 = arith.constant 0 : index
    %c0_12 = arith.constant 0 : index
    %9 = vector.load %arg3[%c0_9, %c0_10, %c0_11, %c0_12] : memref<1x2x32x128xbf16, #tpu.memory_space<vmem>>, vector<1x1x32x128xbf16>
    %10 = vector.shape_cast %9 : vector<1x1x32x128xbf16> to vector<32x128xbf16>
    %c0_13 = arith.constant 0 : index
    %c0_14 = arith.constant 0 : index
    %11 = vector.load %arg5[%c0_13, %c0_14] : memref<32x32xbf16, #tpu.memory_space<vmem>>, vector<32x32xbf16>
    %cst_15 = arith.constant dense<0.000000e+00> : vector<32x128xf32>
    %12 = tpu.matmul %11, %10, %cst_15 {dimension_numbers = #tpu.dot_dimension_numbers<[1], [0], [0], [1], [0, 0, 1, 1], [], []>} : vector<32x32xbf16>, vector<32x128xbf16>, vector<32x128xf32> -> vector<32x128xf32>
    %13 = arith.addf %12, %6 : vector<32x128xf32>
    %cst_16 = arith.constant 0.000000e+00 : f32
    %14 = vector.broadcast %cst_16 : f32 to vector<32x128xf32>
    %15 = arith.maximumf %13, %14 : vector<32x128xf32>
    %16 = arith.truncf %15 : vector<32x128xf32> to vector<32x128xbf16>
    %c0_17 = arith.constant 0 : index
    %c0_18 = arith.constant 0 : index
    %17 = vector.load %arg7[%c0_17, %c0_18] : memref<16x32xbf16, #tpu.memory_space<vmem>>, vector<16x32xbf16>
    %cst_19 = arith.constant dense<0.000000e+00> : vector<16x128xf32>
    %18 = tpu.matmul %17, %16, %cst_19 {dimension_numbers = #tpu.dot_dimension_numbers<[1], [0], [0], [1], [0, 0, 1, 1], [], []>} : vector<16x32xbf16>, vector<32x128xbf16>, vector<16x128xf32> -> vector<16x128xf32>
    %c0_20 = arith.constant 0 : index
    %c0_21 = arith.constant 0 : index
    %19 = vector.load %arg8[%c0_20, %c0_21] : memref<16x1xf32, #tpu.memory_space<vmem>>, vector<16x1xf32>
    %20 = vector.broadcast %19 : vector<16x1xf32> to vector<16x128xf32>
    %21 = arith.addf %18, %20 : vector<16x128xf32>
    %cst_22 = arith.constant 0.000000e+00 : f32
    %22 = vector.broadcast %cst_22 : f32 to vector<16x128xf32>
    %23 = arith.maximumf %21, %22 : vector<16x128xf32>
    %24 = arith.truncf %23 : vector<16x128xf32> to vector<16x128xbf16>
    %c0_23 = arith.constant 0 : index
    %c0_24 = arith.constant 0 : index
    %25 = vector.load %arg9[%c0_23, %c0_24] : memref<8x16xbf16, #tpu.memory_space<vmem>>, vector<8x16xbf16>
    %cst_25 = arith.constant dense<0.000000e+00> : vector<8x128xf32>
    %26 = tpu.matmul %25, %24, %cst_25 {dimension_numbers = #tpu.dot_dimension_numbers<[1], [0], [0], [1], [0, 0, 1, 1], [], []>} : vector<8x16xbf16>, vector<16x128xbf16>, vector<8x128xf32> -> vector<8x128xf32>
    %c0_26 = arith.constant 0 : index
    %c0_27 = arith.constant 0 : index
    %27 = vector.load %arg10[%c0_26, %c0_27] : memref<8x1xf32, #tpu.memory_space<vmem>>, vector<8x1xf32>
    %28 = vector.broadcast %27 : vector<8x1xf32> to vector<8x128xf32>
    %29 = arith.addf %26, %28 : vector<8x128xf32>
    %cst_28 = arith.constant 0.000000e+00 : f32
    %30 = vector.broadcast %cst_28 : f32 to vector<8x128xf32>
    %31 = arith.maximumf %29, %30 : vector<8x128xf32>
    %32 = vector.broadcast %7 : vector<8x1xf32> to vector<8x128xf32>
    %33 = arith.mulf %32, %31 : vector<8x128xf32>
    %cst_29 = arith.constant dense<0.000000e+00> : vector<128xf32>
    %34 = vector.multi_reduction <add>, %33, %cst_29 [0] : vector<8x128xf32> to vector<128xf32>
    %35 = vector.shape_cast %34 : vector<128xf32> to vector<1x128xf32>
    %36 = vector.broadcast %8 : f32 to vector<1x128xf32>
    %37 = arith.addf %35, %36 : vector<1x128xf32>
    %cst_30 = arith.constant 0.000000e+00 : f32
    %38 = vector.broadcast %cst_30 : f32 to vector<1x128xf32>
    %39 = arith.maximumf %37, %38 : vector<1x128xf32>
    %c0_31 = arith.constant 0 : index
    %c1 = arith.constant 1 : index
    %c0_32 = arith.constant 0 : index
    %c0_33 = arith.constant 0 : index
    %40 = vector.load %arg3[%c0_31, %c1, %c0_32, %c0_33] : memref<1x2x32x128xbf16, #tpu.memory_space<vmem>>, vector<1x1x32x128xbf16>
    %41 = vector.shape_cast %40 : vector<1x1x32x128xbf16> to vector<32x128xbf16>
    %c0_34 = arith.constant 0 : index
    %c0_35 = arith.constant 0 : index
    %42 = vector.load %arg5[%c0_34, %c0_35] : memref<32x32xbf16, #tpu.memory_space<vmem>>, vector<32x32xbf16>
    %cst_36 = arith.constant dense<0.000000e+00> : vector<32x128xf32>
    %43 = tpu.matmul %42, %41, %cst_36 {dimension_numbers = #tpu.dot_dimension_numbers<[1], [0], [0], [1], [0, 0, 1, 1], [], []>} : vector<32x32xbf16>, vector<32x128xbf16>, vector<32x128xf32> -> vector<32x128xf32>
    %44 = arith.addf %43, %6 : vector<32x128xf32>
    %cst_37 = arith.constant 0.000000e+00 : f32
    %45 = vector.broadcast %cst_37 : f32 to vector<32x128xf32>
    %46 = arith.maximumf %44, %45 : vector<32x128xf32>
    %47 = arith.truncf %46 : vector<32x128xf32> to vector<32x128xbf16>
    %c0_38 = arith.constant 0 : index
    %c0_39 = arith.constant 0 : index
    %48 = vector.load %arg7[%c0_38, %c0_39] : memref<16x32xbf16, #tpu.memory_space<vmem>>, vector<16x32xbf16>
    %cst_40 = arith.constant dense<0.000000e+00> : vector<16x128xf32>
    %49 = tpu.matmul %48, %47, %cst_40 {dimension_numbers = #tpu.dot_dimension_numbers<[1], [0], [0], [1], [0, 0, 1, 1], [], []>} : vector<16x32xbf16>, vector<32x128xbf16>, vector<16x128xf32> -> vector<16x128xf32>
    %c0_41 = arith.constant 0 : index
    %c0_42 = arith.constant 0 : index
    %50 = vector.load %arg8[%c0_41, %c0_42] : memref<16x1xf32, #tpu.memory_space<vmem>>, vector<16x1xf32>
    %51 = vector.broadcast %50 : vector<16x1xf32> to vector<16x128xf32>
    %52 = arith.addf %49, %51 : vector<16x128xf32>
    %cst_43 = arith.constant 0.000000e+00 : f32
    %53 = vector.broadcast %cst_43 : f32 to vector<16x128xf32>
    %54 = arith.maximumf %52, %53 : vector<16x128xf32>
    %55 = arith.truncf %54 : vector<16x128xf32> to vector<16x128xbf16>
    %c0_44 = arith.constant 0 : index
    %c0_45 = arith.constant 0 : index
    %56 = vector.load %arg9[%c0_44, %c0_45] : memref<8x16xbf16, #tpu.memory_space<vmem>>, vector<8x16xbf16>
    %cst_46 = arith.constant dense<0.000000e+00> : vector<8x128xf32>
    %57 = tpu.matmul %56, %55, %cst_46 {dimension_numbers = #tpu.dot_dimension_numbers<[1], [0], [0], [1], [0, 0, 1, 1], [], []>} : vector<8x16xbf16>, vector<16x128xbf16>, vector<8x128xf32> -> vector<8x128xf32>
    %c0_47 = arith.constant 0 : index
    %c0_48 = arith.constant 0 : index
    %58 = vector.load %arg10[%c0_47, %c0_48] : memref<8x1xf32, #tpu.memory_space<vmem>>, vector<8x1xf32>
    %59 = vector.broadcast %58 : vector<8x1xf32> to vector<8x128xf32>
    %60 = arith.addf %57, %59 : vector<8x128xf32>
    %cst_49 = arith.constant 0.000000e+00 : f32
    %61 = vector.broadcast %cst_49 : f32 to vector<8x128xf32>
    %62 = arith.maximumf %60, %61 : vector<8x128xf32>
    %63 = vector.broadcast %7 : vector<8x1xf32> to vector<8x128xf32>
    %64 = arith.mulf %63, %62 : vector<8x128xf32>
    %cst_50 = arith.constant dense<0.000000e+00> : vector<128xf32>
    %65 = vector.multi_reduction <add>, %64, %cst_50 [0] : vector<8x128xf32> to vector<128xf32>
    %66 = vector.shape_cast %65 : vector<128xf32> to vector<1x128xf32>
    %67 = vector.broadcast %8 : f32 to vector<1x128xf32>
    %68 = arith.addf %66, %67 : vector<1x128xf32>
    %cst_51 = arith.constant 0.000000e+00 : f32
    %69 = vector.broadcast %cst_51 : f32 to vector<1x128xf32>
    %70 = arith.maximumf %68, %69 : vector<1x128xf32>
    %71 = arith.maximumf %39, %70 : vector<1x128xf32>
    %72 = arith.subf %39, %71 : vector<1x128xf32>
    %73 = math.exp %72 : vector<1x128xf32>
    %74 = arith.subf %70, %71 : vector<1x128xf32>
    %75 = math.exp %74 : vector<1x128xf32>
    %76 = arith.addf %73, %75 : vector<1x128xf32>
    %77 = tpu.reciprocal %76 : vector<1x128xf32> -> vector<1x128xf32>
    %78 = arith.mulf %73, %77 : vector<1x128xf32>
    %c0_52 = arith.constant 0 : index
    %c0_53 = arith.constant 0 : index
    %c0_54 = arith.constant 0 : index
    %c0_55 = arith.constant 0 : index
    %79 = vector.load %arg3[%c0_52, %c0_53, %c0_54, %c0_55] : memref<1x2x32x128xbf16, #tpu.memory_space<vmem>>, vector<1x1x32x128xbf16>
    %80 = vector.shape_cast %79 : vector<1x1x32x128xbf16> to vector<32x128xbf16>
    %81 = arith.extf %80 : vector<32x128xbf16> to vector<32x128xf32>
    %82 = vector.broadcast %78 : vector<1x128xf32> to vector<32x128xf32>
    %83 = arith.mulf %82, %81 : vector<32x128xf32>
    %84 = arith.mulf %75, %77 : vector<1x128xf32>
    %c0_56 = arith.constant 0 : index
    %c1_57 = arith.constant 1 : index
    %c0_58 = arith.constant 0 : index
    %c0_59 = arith.constant 0 : index
    %85 = vector.load %arg3[%c0_56, %c1_57, %c0_58, %c0_59] : memref<1x2x32x128xbf16, #tpu.memory_space<vmem>>, vector<1x1x32x128xbf16>
    %86 = vector.shape_cast %85 : vector<1x1x32x128xbf16> to vector<32x128xbf16>
    %87 = arith.extf %86 : vector<32x128xbf16> to vector<32x128xf32>
    %88 = vector.broadcast %84 : vector<1x128xf32> to vector<32x128xf32>
    %89 = arith.mulf %88, %87 : vector<32x128xf32>
    %90 = arith.addf %83, %89 : vector<32x128xf32>
    %c0_60 = arith.constant 0 : index
    %c0_61 = arith.constant 0 : index
    %c0_62 = arith.constant 0 : index
    %91 = vector.load %arg13[%c0_60, %c0_61, %c0_62] : memref<1x32x128xf32, #tpu.memory_space<vmem>>, vector<1x32x128xf32>
    %92 = vector.shape_cast %91 : vector<1x32x128xf32> to vector<32x128xf32>
    %93 = vector.shape_cast %90 : vector<32x128xf32> to vector<1x32x128xf32>
    tpu.vector_store %arg13[%c0_60, %c0_61, %c0_62], %93 {strides = array<i32>} : memref<1x32x128xf32, #tpu.memory_space<vmem>>, vector<1x32x128xf32>,
    return
  }
  func.func @transform_0(%arg0: i32, %arg1: i32) -> (i32, i32, i32) {
    %c0_i32 = arith.constant 0 : i32
    %c0_i32_0 = arith.constant 0 : i32
    return %arg0, %c0_i32, %arg1 : i32, i32, i32
  }
  func.func @transform_1(%arg0: i32, %arg1: i32) -> (i32, i32, i32, i32) {
    %c0_i32 = arith.constant 0 : i32
    %c0_i32_0 = arith.constant 0 : i32
    %c0_i32_1 = arith.constant 0 : i32
    return %arg0, %c0_i32, %c0_i32_0, %arg1 : i32, i32, i32, i32
  }
  func.func @transform_2(%arg0: i32, %arg1: i32) -> (i32, i32) {
    %c0_i32 = arith.constant 0 : i32
    %c0_i32_0 = arith.constant 0 : i32
    %c0_i32_1 = arith.constant 0 : i32
    return %c0_i32, %c0_i32_0 : i32, i32
  }
  func.func @transform_3(%arg0: i32, %arg1: i32) -> (i32, i32) {
    %c0_i32 = arith.constant 0 : i32
    %c0_i32_0 = arith.constant 0 : i32
    %c0_i32_1 = arith.constant 0 : i32
    return %c0_i32, %c0_i32_0 : i32, i32
  }
  func.func @transform_4(%arg0: i32, %arg1: i32) -> (i32, i32) {
    %c0_i32 = arith.constant 0 : i32
    %c0_i32_0 = arith.constant 0 : i32
    %c0_i32_1 = arith.constant 0 : i32
    return %c0_i32, %c0_i32_0 : i32, i32
  }
  func.func @transform_5(%arg0: i32, %arg1: i32) -> (i32, i32) {
    %c0_i32 = arith.constant 0 : i32
    %c0_i32_0 = arith.constant 0 : i32
    %c0_i32_1 = arith.constant 0 : i32
    return %c0_i32, %c0_i32_0 : i32, i32
  }
  func.func @transform_6(%arg0: i32, %arg1: i32) -> (i32, i32) {
    %c0_i32 = arith.constant 0 : i32
    %c0_i32_0 = arith.constant 0 : i32
    %c0_i32_1 = arith.constant 0 : i32
    return %c0_i32, %c0_i32_0 : i32, i32
  }
  func.func @transform_7(%arg0: i32, %arg1: i32) -> (i32, i32) {
    %c0_i32 = arith.constant 0 : i32
    %c0_i32_0 = arith.constant 0 : i32
    %c0_i32_1 = arith.constant 0 : i32
    return %c0_i32, %c0_i32_0 : i32, i32
  }
  func.func @transform_8(%arg0: i32, %arg1: i32) -> (i32, i32) {
    %c0_i32 = arith.constant 0 : i32
    %c0_i32_0 = arith.constant 0 : i32
    %c0_i32_1 = arith.constant 0 : i32
    return %c0_i32, %c0_i32_0 : i32, i32
  }
  func.func @transform_9(%arg0: i32, %arg1: i32) -> (i32, i32) {
    %c0_i32 = arith.constant 0 : i32
    %c0_i32_0 = arith.constant 0 : i32
    %c0_i32_1 = arith.constant 0 : i32
    return %c0_i32, %c0_i32_0 : i32, i32
  }
  func.func @transform_10(%arg0: i32, %arg1: i32) -> i32 {
    %c0_i32 = arith.constant 0 : i32
    %c0_i32_0 = arith.constant 0 : i32
    return %c0_i32 : i32
  }
  func.func @transform_11(%arg0: i32, %arg1: i32) -> (i32, i32, i32) {
    %c0_i32 = arith.constant 0 : i32
    %c0_i32_0 = arith.constant 0 : i32
    return %arg0, %c0_i32, %arg1 : i32, i32, i32
  }
}

</mosaic_0001>

<llo_original>
// kernel: custom-call.11
$region0: #{custom-call.11}
  %s0 = inlined_call_operand.hbm [shape: f32[3,3], index: 0, kind: input, shape index: {}]
  %s1 = inlined_call_operand.vmem [shape: f32[3,3], index: 1, kind: output, shape index: {0}]
  %s2 = inlined_call_operand.hbm [shape: s32[3], index: 2, kind: output, shape index: {1}]
  %s3 = inlined_call_operand.vmem [shape: s32[3], index: 3, kind: output, shape index: {2}]
  %4 = xla_tuple %s1, %s2, %s3
  $region1: #{custom-call.11} parent=0
    #allocation0 [shape = 'u8[4096]{0}', space=vmem, size = 0x1000, scoped, tag = 'operand span for operand 0']
    #allocation1 [shape = 'u8[2048]{0}', space=vmem, size = 0x800, scoped, tag = 'packed  for operand 0']
    #allocation2 [shape = 's32[1]{0}', space=sflag, size = 0x4, scoped, tag = 'scoped memory for custom-call.11']
    #allocation3 [shape = 's32[1]{0}', space=sflag, size = 0x4, scoped, tag = 'scoped memory for custom-call.11']
    #allocation4 [shape = 'u8[4096]{0}', space=vmem, size = 0x1000, scoped, tag = 'operand span for operand 1']
    #allocation5 [shape = 'u8[2048]{0}', space=vmem, size = 0x800, scoped, tag = 'packed  for operand 1']
    #allocation6 [shape = 'u8[4096]{0}', space=vmem, size = 0x1000, scoped, tag = 'operand span for operand 2']
    #allocation7 [shape = 'u8[512]{0}', space=vmem, size = 0x400, scoped, tag = 'packed  for operand 2']
    #allocation8 [shape = 'u8[4096]{0}', space=vmem, size = 0x1000, scoped, tag = 'operand span for operand 3']
    #allocation9 [shape = 'u8[512]{0}', space=vmem, size = 0x400, scoped, tag = 'packed  for operand 3']
    #allocation10 [shape = 's32[3,128]{1,0}', space=vmem, size = 0x1000, scoped, tag = 'scratch for permutations']
    %5 = vsyncpa [#allocation2], 0
    %6 = vsyncpa [#allocation3], 0
    %s8 = ssub.s32 64, 64
    %9 = vsyncadd [#allocation2], %s8
    %s10 = sshll.u32 [#allocation1], 4
    %s11 = int_to_ptr.vmem [resolvable:$true] %s10
    %13 = dma.hbm_to_vmem [thread:$0]  %s0, 64, %s11, [#allocation2]
    %14 = dma.done [#allocation2], 64
    %s16 = sshllo.u32 0, 4
    %v17 = vld [vmem:[#allocation1] sm:%s16]
    %18 = vst [vmem:[#allocation0] sm:%s16] %v17
    %v19 = vld [vmem:[#allocation0] sm:$0xff]
    %20 = vst [vmem:[#allocation4] sm:$0xff] %v19
    %21 = vst [vmem:[#allocation6] sm:$0x1] 0
    %v22 = vlaneseq
    %v23 = vshrl.u32 %v22, 7
    %v24 = vmov %v23
    %26 = vst [vmem:[#allocation10] sm:$0xff] %v24
    loop: start=0, step=1, limit=3
    $region3: #{custom-call.11} parent=1 // loop_pre_header
      _
    $region4: #{custom-call.11} parent=1 // loop_header
      %s28 = sphi 0, %s32
      %p29 = scmp.ge.s32.totalorder %s28, 3
    $region5: #{custom-call.11} parent=1 // loop_header_branch
      %31 = sbr.rel (%p29) target = $region9
    $region6: #{custom-call.11} parent=1 // loop_body
      %v33 = vstv %s28
      %v34 = vlaneseq
      %v35 = vshrl.u32 %v34, 7
      %v36 = vmov %v35
      %v37 = vld [vmem:[#allocation4] sm:$0xff]
      %v38 = vand.u32 2147483647, %v37
      %v40 = vstv %s28
      %vm41 = vcmp.ge.s32.totalorder %v36, %v40
      %vm42 = vcmp.lt.s32.totalorder %v36, 3
      %vm43 = vmand %vm41, %vm42
      %vm44 = vcmp.lt.f32.partialorder -inf, %v38
      %vm45 = vmand %vm43, %vm44
      %v46 = vsel %vm45, %v36, %v33
      %v47 = vsel %vm45, %v38, -inf
      %v48 = vrot.slane %v47, 1
      %v49 = vrot.slane %v46, 1
      %vm50 = vcmp.ge.f32.partialorder %v48, %v47
      %v51 = vsel %vm50, %v48, %v47
      %v52 = vsel %vm50, %v49, %v46
      %v53 = vrot.slane %v48, 1
      %v54 = vrot.slane %v49, 1
      %vm55 = vcmp.ge.f32.partialorder %v53, %v51
      %v56 = vsel %vm55, %v53, %v51
      %v57 = vsel %vm55, %v54, %v52
      %v58 = vrot.slane %v53, 1
      %v59 = vrot.slane %v54, 1
      %vm60 = vcmp.ge.f32.partialorder %v58, %v56
      %v61 = vsel %vm60, %v58, %v56
      %v62 = vsel %vm60, %v59, %v57
      %v63 = vrot.slane %v58, 1
      %v64 = vrot.slane %v59, 1
      %vm65 = vcmp.ge.f32.partialorder %v63, %v61
      %v66 = vsel %vm65, %v63, %v61
      %v67 = vsel %vm65, %v64, %v62
      %v68 = vrot.slane %v63, 1
      %v69 = vrot.slane %v64, 1
      %vm70 = vcmp.ge.f32.partialorder %v68, %v66
      %v71 = vsel %vm70, %v68, %v66
      %v72 = vsel %vm70, %v69, %v67
      %v73 = vrot.slane %v68, 1
      %v74 = vrot.slane %v69, 1
      %vm75 = vcmp.ge.f32.partialorder %v73, %v71
      %v76 = vsel %vm75, %v73, %v71
      %v77 = vsel %vm75, %v74, %v72
      %v78 = vrot.slane %v73, 1
      %v79 = vrot.slane %v74, 1
      %vm80 = vcmp.ge.f32.partialorder %v78, %v76
      %v81 = vsel %vm80, %v78, %v76
      %v82 = vsel %vm80, %v79, %v77
      %s83 = ssub.s32 128, %s28
      %84 = vrot.lane.b32.xlu0 %v82, %s83
      %v85 = vpop.permute.xlu0 %84
      %s86 = vtos %v85
      %v87 = vstv %s28
      %v88 = vlaneseq
      %v89 = vand.u32 %v88, 127
      %vm90 = vcmp.eq.s32.totalorder %v89, %v87
      %v91 = vstv %s86
      %v92 = vld [vmem:[#allocation6] ss:$0 sm:$0xff]
      %v93 = vsel %vm90, %v91, %v92
      %94 = vst [vmem:[#allocation6] sm:$0x1] %v93
      %s95 = scalar_lea.vmem [#allocation4], %s28
      %s96 = scalar_lea.vmem [#allocation4], %s86
      %v97 = vld [vmem:[%s95] ss:$0 sm:$0xff]
      %v98 = vld [vmem:[%s96] ss:$0 sm:$0xff]
      %99 = vst [vmem:[%s96] sm:$0x1] %v97
      %100 = vst [vmem:[%s95] sm:$0x1] %v98
      %s101 = scalar_lea.vmem [#allocation10], %s28
      %s102 = scalar_lea.vmem [#allocation10], %s86
      %v103 = vld [vmem:[%s101] ss:$0 sm:$0xff]
      %v104 = vld [vmem:[%s102] ss:$0 sm:$0xff]
      %105 = vst [vmem:[%s102] sm:$0x1] %v103
      %106 = vst [vmem:[%s101] sm:$0x1] %v104
      %vm107 = vcmp.ne.f32.partialorder %v98, 0.0
      %vm108 = vmand %vm90, %vm107
      %v109 = vsel %vm108, %v98, 1.0
      %v110 = vlaneseq
      %v111 = vand.u32 %v110, 127
      %v112 = vstv %s28
      %vm113 = vcmp.gt.s32.totalorder %v111, %v112
      %v114 = vsel %vm113, %v98, 0.0
      %v115 = vlaneseq
      %v116 = vshrl.u32 %v115, 7
      %v117 = vmov %v116
      %v118 = vld [vmem:[#allocation4] sm:$0xff]
      %v120 = vstv %s28
      %vm121 = vcmp.gt.s32.totalorder %v117, %v120
      %v122 = vsel %vm121, %v109, 1.0
      %v123 = vrcp.pop %v122
      %v124 = vmul.f32 %v118, %v123
      %vm125 = vmand %vm121, %vm90
      %v126 = vsel %vm125, %v124, 0.0
      %127 = vadd.xlane.f32.xlu0 %v126
      %v128 = vpop.xlane.xlu0 %127
      %v129 = vmul.f32 %v128, %v114
      %v130 = vsub.f32 %v124, %v129
      %131 = vst [vmem:[#allocation4] sm:$0xff] %v130
    $region7: #{custom-call.11} parent=1 // loop_footer
      %s32 = sadd.s32 1, %s28
    $region8: #{custom-call.11} parent=1 // loop_footer_branch
      %27 = sbr.rel target = $region4
    $region9: #{custom-call.11} parent=1 // loop_exit
      _
    %v132 = vld [vmem:[#allocation10] sm:$0xff]
    %s133 = scalar_lea.vmem [#allocation10], 8
    %s134 = scalar_lea.vmem [#allocation10], 16
    %s135 = scalar_lea.vmem [#allocation10], 24
    %s136 = scalar_lea.vmem [#allocation10], 32
    %s137 = scalar_lea.vmem [#allocation10], 40
    %s138 = scalar_lea.vmem [#allocation10], 48
    %s139 = scalar_lea.vmem [#allocation10], 56
    %s140 = scalar_lea.vmem [#allocation10], 64
    %s141 = scalar_lea.vmem [#allocation10], 72
    %s142 = scalar_lea.vmem [#allocation10], 80
    %s143 = scalar_lea.vmem [#allocation10], 88
    %s144 = scalar_lea.vmem [#allocation10], 96
    %s145 = scalar_lea.vmem [#allocation10], 104
    %s146 = scalar_lea.vmem [#allocation10], 112
    %s147 = scalar_lea.vmem [#allocation10], 120
    %148 = vxpose.xlu0.b32.start [1/16] %v132, 128
    %149 = vxpose.xlu0.b32.cont [2/16] 0, 128
    %150 = vxpose.xlu0.b32.cont [3/16] 0, 128
    %151 = vxpose.xlu0.b32.cont [4/16] 0, 128
    %152 = vxpose.xlu0.b32.cont [5/16] 0, 128
    %153 = vxpose.xlu0.b32.cont [6/16] 0, 128
    %154 = vxpose.xlu0.b32.cont [7/16] 0, 128
    %155 = vxpose.xlu0.b32.cont [8/16] 0, 128
    %156 = vxpose.xlu0.b32.cont [9/16] 0, 128
    %157 = vxpose.xlu0.b32.cont [10/16] 0, 128
    %158 = vxpose.xlu0.b32.cont [11/16] 0, 128
    %159 = vxpose.xlu0.b32.cont [12/16] 0, 128
    %160 = vxpose.xlu0.b32.cont [13/16] 0, 128
    %161 = vxpose.xlu0.b32.cont [14/16] 0, 128
    %162 = vxpose.xlu0.b32.cont [15/16] 0, 128
    %163 = vxpose.xlu0.b32.end [16/16] 0, 128
    %v164 = vpop.trf.xlu0
    %v165 = vpop.trf.xlu0
    %v166 = vpop.trf.xlu0
    %v167 = vpop.trf.xlu0
    %v168 = vpop.trf.xlu0
    %v169 = vpop.trf.xlu0
    %v170 = vpop.trf.xlu0
    %v171 = vpop.trf.xlu0
    %v172 = vpop.trf.xlu0
    %v173 = vpop.trf.xlu0
    %v174 = vpop.trf.xlu0
    %v175 = vpop.trf.xlu0
    %v176 = vpop.trf.xlu0
    %v177 = vpop.trf.xlu0
    %v178 = vpop.trf.xlu0
    %v179 = vpop.trf.xlu0
    %180 = vst [vmem:[#allocation8] sm:$0x1] %v164
    %s182 = sshllo.u32 0, 4
    %v184 = vld [vmem:[#allocation4] sm:%s182]
    %s185 = sshllo.u32 0, 4
    %186 = vst [vmem:[#allocation5] sm:%s185] %v184
    %s188 = sshllo.u32 0, 1
    %v190 = vld [vmem:[#allocation6] sm:%s188]
    %s191 = sshllo.u32 0, 1
    %192 = vst [vmem:[#allocation7] sm:%s191] %v190
    %s194 = sshllo.u32 0, 1
    %v196 = vld [vmem:[#allocation8] sm:%s194]
    %s197 = sshllo.u32 0, 1
    %198 = vst [vmem:[#allocation9] sm:%s197] %v196
    %p200 = scmp.gt.s32.totalorder 4, 0
    // Predicated region
    $region10: #{custom-call.11} parent=1 // pred_check
      %p201 = pneg %p200
    $region11: #{custom-call.11} parent=1 // pred_check_branch
      %203 = sbr.rel (%p201) target = $region13
    $region12: #{custom-call.11} parent=1 // pred_region
      %s204 = sshra.s32 4, 3
      %p205 = scmp.gt.s32.totalorder %s204, 0
      // Predicated region
      $region14: #{custom-call.11} parent=12 // pred_check
        %p206 = pneg %p205
      $region15: #{custom-call.11} parent=12 // pred_check_branch
        %208 = sbr.rel (%p206) target = $region17
      $region16: #{custom-call.11} parent=12 // pred_region
        %s209 = ssub.s32 %s204, 1
        %s210 = smul.u32 %s209, 128
        %s211 = sshra.s32 %s210, 4
        %s212 = scalar_lea.vmem [#allocation5], %s211
        %v213 = vld [vmem:[#allocation5] sm:$0xff]
        // While loop
        $region18: #{custom-call.11} parent=16 // loop_pre_header
          _
        $region19: #{custom-call.11} parent=16 // loop_header
          %s214 = sphi [#allocation5], %s236
          %s215 = sphi %s1, %s237
          %v216 = vphi %v213, %v238
          %s217 = ssub.s32 %s212, 64
          %p218 = scmp.gt.s32.totalorder %s214, %s217
        $region20: #{custom-call.11} parent=16 // loop_header_branch
          %220 = sbr.rel (%p218) target = $region24
        $region21: #{custom-call.11} parent=16 // loop_body
          %221 = vst [vmem:[%s215] sm:$0xff] %v216
          %v222 = vld [vmem:[%s214 + $0x8] sm:$0xff]
          %223 = vst [vmem:[%s215 + $0x8] sm:$0xff] %v222
          %v224 = vld [vmem:[%s214 + $0x10] sm:$0xff]
          %225 = vst [vmem:[%s215 + $0x10] sm:$0xff] %v224
          %v226 = vld [vmem:[%s214 + $0x18] sm:$0xff]
          %227 = vst [vmem:[%s215 + $0x18] sm:$0xff] %v226
          %v228 = vld [vmem:[%s214 + $0x20] sm:$0xff]
          %229 = vst [vmem:[%s215 + $0x20] sm:$0xff] %v228
          %v230 = vld [vmem:[%s214 + $0x28] sm:$0xff]
          %231 = vst [vmem:[%s215 + $0x28] sm:$0xff] %v230
          %v232 = vld [vmem:[%s214 + $0x30] sm:$0xff]
          %233 = vst [vmem:[%s215 + $0x30] sm:$0xff] %v232
          %v234 = vld [vmem:[%s214 + $0x38] sm:$0xff]
          %235 = vst [vmem:[%s215 + $0x38] sm:$0xff] %v234
        $region22: #{custom-call.11} parent=16 // loop_footer
          %s236 = scalar_lea.vmem %s214, 64
          %s237 = scalar_lea.vmem %s215, 64
          %v238 = vld [vmem:[%s214 + $0x40] sm:$0xff]
        $region23: #{custom-call.11} parent=16 // loop_footer_branch
          %239 = sbr.rel target = $region19
        $region24: #{custom-call.11} parent=16 // loop_exit
          _
        // While loop
        $region25: #{custom-call.11} parent=16 // loop_pre_header
          _
        $region26: #{custom-call.11} parent=16 // loop_header
          %s240 = sphi %s214, %s248
          %s241 = sphi %s215, %s249
          %v242 = vphi %v216, %v242
          %p243 = scmp.gt.s32.totalorder %s240, %s212
        $region27: #{custom-call.11} parent=16 // loop_header_branch
          %245 = sbr.rel (%p243) target = $region31
        $region28: #{custom-call.11} parent=16 // loop_body
          %v246 = vld [vmem:[%s240] sm:$0xff]
          %247 = vst [vmem:[%s241] sm:$0xff] %v246
        $region29: #{custom-call.11} parent=16 // loop_footer
          %s248 = scalar_lea.vmem %s240, 8
          %s249 = scalar_lea.vmem %s241, 8
        $region30: #{custom-call.11} parent=16 // loop_footer_branch
          %250 = sbr.rel target = $region26
        $region31: #{custom-call.11} parent=16 // loop_exit
          _
      $region17: #{custom-call.11} parent=12 // pred_fallthru
        _
      %s251 = sand.u32 4, 7
      %s252 = sshllo.u32 0, %s251
      %s253 = smul.u32 %s204, 128
      %s254 = sshra.s32 %s253, 4
      %s255 = scalar_lea.vmem %s1, %s254
      %s256 = smul.u32 %s204, 128
      %s257 = sshra.s32 %s256, 4
      %s258 = scalar_lea.vmem [#allocation5], %s257
      %v259 = vld [vmem:[%s258] sm:%s252]
      %260 = vst [vmem:[%s255] sm:%s252] %v259
    $region13: #{custom-call.11} parent=1 // pred_fallthru
      _
    // Predicated region
    $region32: #{custom-call.11} parent=1 // pred_check
      _
    $region33: #{custom-call.11} parent=1 // pred_check_branch
      %262 = sbr.rel (0) target = $region35
    $region34: #{custom-call.11} parent=1 // pred_region
      %s264 = ssub.s32 16, 16
      %265 = vsyncadd [#allocation3], %s264
      %s266 = sshll.u32 [#allocation7], 4
      %s267 = int_to_ptr.vmem [resolvable:$true] %s266
      %269 = dma.vmem_to_hbm [thread:$0]  %s267, 16, %s2, [#allocation3]
    $region35: #{custom-call.11} parent=1 // pred_fallthru
      _
    // Predicated region
    $region36: #{custom-call.11} parent=1 // pred_check
      _
    $region37: #{custom-call.11} parent=1 // pred_check_branch
      %271 = sbr.rel (0) target = $region39
    $region38: #{custom-call.11} parent=1 // pred_region
      %p273 = scmp.gt.s32.totalorder 1, 0
      // Predicated region
      $region40: #{custom-call.11} parent=38 // pred_check
        %p274 = pneg %p273
      $region41: #{custom-call.11} parent=38 // pred_check_branch
        %276 = sbr.rel (%p274) target = $region43
      $region42: #{custom-call.11} parent=38 // pred_region
        %s277 = sshra.s32 1, 3
        %p278 = scmp.gt.s32.totalorder %s277, 0
        // Predicated region
        $region44: #{custom-call.11} parent=42 // pred_check
          %p279 = pneg %p278
        $region45: #{custom-call.11} parent=42 // pred_check_branch
          %281 = sbr.rel (%p279) target = $region47
        $region46: #{custom-call.11} parent=42 // pred_region
          %s282 = ssub.s32 %s277, 1
          %s283 = smul.u32 %s282, 128
          %s284 = sshra.s32 %s283, 4
          %s285 = scalar_lea.vmem [#allocation9], %s284
          %v286 = vld [vmem:[#allocation9] sm:$0xff]
          // While loop
          $region48: #{custom-call.11} parent=46 // loop_pre_header
            _
          $region49: #{custom-call.11} parent=46 // loop_header
            %s287 = sphi [#allocation9], %s309
            %s288 = sphi %s3, %s310
            %v289 = vphi %v286, %v311
            %s290 = ssub.s32 %s285, 64
            %p291 = scmp.gt.s32.totalorder %s287, %s290
          $region50: #{custom-call.11} parent=46 // loop_header_branch
            %293 = sbr.rel (%p291) target = $region54
          $region51: #{custom-call.11} parent=46 // loop_body
            %294 = vst [vmem:[%s288] sm:$0xff] %v289
            %v295 = vld [vmem:[%s287 + $0x8] sm:$0xff]
            %296 = vst [vmem:[%s288 + $0x8] sm:$0xff] %v295
            %v297 = vld [vmem:[%s287 + $0x10] sm:$0xff]
            %298 = vst [vmem:[%s288 + $0x10] sm:$0xff] %v297
            %v299 = vld [vmem:[%s287 + $0x18] sm:$0xff]
            %300 = vst [vmem:[%s288 + $0x18] sm:$0xff] %v299
            %v301 = vld [vmem:[%s287 + $0x20] sm:$0xff]
            %302 = vst [vmem:[%s288 + $0x20] sm:$0xff] %v301
            %v303 = vld [vmem:[%s287 + $0x28] sm:$0xff]
            %304 = vst [vmem:[%s288 + $0x28] sm:$0xff] %v303
            %v305 = vld [vmem:[%s287 + $0x30] sm:$0xff]
            %306 = vst [vmem:[%s288 + $0x30] sm:$0xff] %v305
            %v307 = vld [vmem:[%s287 + $0x38] sm:$0xff]
            %308 = vst [vmem:[%s288 + $0x38] sm:$0xff] %v307
          $region52: #{custom-call.11} parent=46 // loop_footer
            %s309 = scalar_lea.vmem %s287, 64
            %s310 = scalar_lea.vmem %s288, 64
            %v311 = vld [vmem:[%s287 + $0x40] sm:$0xff]
          $region53: #{custom-call.11} parent=46 // loop_footer_branch
            %312 = sbr.rel target = $region49
          $region54: #{custom-call.11} parent=46 // loop_exit
            _
          // While loop
          $region55: #{custom-call.11} parent=46 // loop_pre_header
            _
          $region56: #{custom-call.11} parent=46 // loop_header
            %s313 = sphi %s287, %s321
            %s314 = sphi %s288, %s322
            %v315 = vphi %v289, %v315
            %p316 = scmp.gt.s32.totalorder %s313, %s285
          $region57: #{custom-call.11} parent=46 // loop_header_branch
            %318 = sbr.rel (%p316) target = $region61
          $region58: #{custom-call.11} parent=46 // loop_body
            %v319 = vld [vmem:[%s313] sm:$0xff]
            %320 = vst [vmem:[%s314] sm:$0xff] %v319
          $region59: #{custom-call.11} parent=46 // loop_footer
            %s321 = scalar_lea.vmem %s313, 8
            %s322 = scalar_lea.vmem %s314, 8
          $region60: #{custom-call.11} parent=46 // loop_footer_branch
            %323 = sbr.rel target = $region56
          $region61: #{custom-call.11} parent=46 // loop_exit
            _
        $region47: #{custom-call.11} parent=42 // pred_fallthru
          _
        %s324 = sand.u32 1, 7
        %s325 = sshllo.u32 0, %s324
        %s326 = smul.u32 %s277, 128
        %s327 = sshra.s32 %s326, 4
        %s328 = scalar_lea.vmem %s3, %s327
        %s329 = smul.u32 %s277, 128
        %s330 = sshra.s32 %s329, 4
        %s331 = scalar_lea.vmem [#allocation9], %s330
        %v332 = vld [vmem:[%s331] sm:%s325]
        %333 = vst [vmem:[%s328] sm:%s325] %v332
      $region43: #{custom-call.11} parent=38 // pred_fallthru
        _
    $region39: #{custom-call.11} parent=1 // pred_fallthru
      _
    // Predicated region
    $region62: #{custom-call.11} parent=1 // pred_check
      _
    $region63: #{custom-call.11} parent=1 // pred_check_branch
      %335 = sbr.rel (0) target = $region65
    $region64: #{custom-call.11} parent=1 // pred_region
      %336 = dma.done [#allocation3], 16
    $region65: #{custom-call.11} parent=1 // pred_fallthru
      _
    // Predicated region
    $region66: #{custom-call.11} parent=1 // pred_check
      _
    $region67: #{custom-call.11} parent=1 // pred_check_branch
      %338 = sbr.rel (0) target = $region69
    $region68: #{custom-call.11} parent=1 // pred_region
      _
    $region69: #{custom-call.11} parent=1 // pred_fallthru
      _
    %339 = vsyncpa [#allocation2], 1
    %340 = vsyncpa [#allocation3], 1

// kernel: custom-call.13
$region0: #{custom-call.13}
  %s0 = inlined_call_operand.vmem [shape: f32[1,3,3], index: 0, kind: input, shape index: {}]
  %s1 = inlined_call_operand.vmem [shape: f32[1,3,3], index: 1, kind: output, shape index: {}]
  $region1: #{custom-call.13} parent=0
    #allocation0 [shape = 'u8[4096]{0}', space=vmem, size = 0x1000, scoped, tag = 'operand span for operand 0']
    #allocation1 [shape = 'u8[2048]{0}', space=vmem, size = 0x800, scoped, tag = 'packed  for operand 0']
    #allocation2 [shape = 'u8[4096]{0}', space=vmem, size = 0x1000, scoped, tag = 'operand span for operand 1']
    #allocation3 [shape = 'u8[2048]{0}', space=vmem, size = 0x800, scoped, tag = 'packed  for operand 1']
    #allocation4 [shape = 'f32[3,3]{1,0}', space=vmem, size = 0x1000, scoped, tag = 'rescaled input a']
    // Predicated region
    $region2: #{custom-call.13} parent=1 // pred_check
      _
    $region3: #{custom-call.13} parent=1 // pred_check_branch
      %3 = sbr.rel (0) target = $region5
    $region4: #{custom-call.13} parent=1 // pred_region
      // Predicated region
      $region6: #{custom-call.13} parent=4 // pred_check
        _
      $region7: #{custom-call.13} parent=4 // pred_check_branch
        %5 = sbr.rel target = $region9
      $region8: #{custom-call.13} parent=4 // pred_region
        // Predicated region
        $region21: #{custom-call.13} parent=8 // pred_check
          _
        $region22: #{custom-call.13} parent=8 // pred_check_branch
          %20 = sbr.rel (0) target = $region24
        $region23: #{custom-call.13} parent=8 // pred_region
          loop: start=0, step=1, limit=1
          $region25: #{custom-call.13} parent=23 // loop_pre_header
            _
          $region26: #{custom-call.13} parent=23 // loop_header
            %s23 = sphi 0, %s27
            %p24 = scmp.ge.s32.totalorder %s23, 1
            %s28 = sphi %s0, %s0
            %s29 = sphi [#allocation1], [#allocation1]
          $region27: #{custom-call.13} parent=23 // loop_header_branch
            %26 = sbr.rel (%p24) target = $region31
          $region28: #{custom-call.13} parent=23 // loop_body
            %v30 = vld [vmem:[%s28] sm:$0xf]
            %31 = vst [vmem:[%s29] sm:$0xf] %v30
          $region29: #{custom-call.13} parent=23 // loop_footer
            %s27 = sadd.s32 1, %s23
          $region30: #{custom-call.13} parent=23 // loop_footer_branch
            %22 = sbr.rel target = $region26
          $region31: #{custom-call.13} parent=23 // loop_exit
            _
        $region24: #{custom-call.13} parent=8 // pred_fallthru
          _
      $region9: #{custom-call.13} parent=4 // pred_fallthru
        _
      // Predicated region
      $region10: #{custom-call.13} parent=4 // pred_check
        _
      $region11: #{custom-call.13} parent=4 // pred_check_branch
        %7 = sbr.rel (0) target = $region13
      $region12: #{custom-call.13} parent=4 // pred_region
        loop: start=0, step=1, limit=1
        $region14: #{custom-call.13} parent=12 // loop_pre_header
          _
        $region15: #{custom-call.13} parent=12 // loop_header
          %s10 = sphi 0, %s14
          %p11 = scmp.ge.s32.totalorder %s10, 1
          %s15 = sphi %s0, %s0
          %s16 = sphi [#allocation1], [#allocation1]
        $region16: #{custom-call.13} parent=12 // loop_header_branch
          %13 = sbr.rel (%p11) target = $region20
        $region17: #{custom-call.13} parent=12 // loop_body
          %v17 = vld [vmem:[%s15] sm:$0xf]
          %18 = vst [vmem:[%s16] sm:$0xf] %v17
        $region18: #{custom-call.13} parent=12 // loop_footer
          %s14 = sadd.s32 1, %s10
        $region19: #{custom-call.13} parent=12 // loop_footer_branch
          %9 = sbr.rel target = $region15
        $region20: #{custom-call.13} parent=12 // loop_exit
          _
      $region13: #{custom-call.13} parent=4 // pred_fallthru
        _
    $region5: #{custom-call.13} parent=1 // pred_fallthru
      _
    %32 = vnop
    %s34 = sshllo.u32 0, 4
    %v35 = vld [vmem:[#allocation1] sm:%s34]
    %36 = vst [vmem:[#allocation0] sm:%s34] %v35
    %v37 = vlaneseq
    %v38 = vand.u32 %v37, 127
    %vm39 = vcmp.lt.s32.totalorder %v38, 3
    %v40 = vlaneseq
    %v41 = vshrl.u32 %v40, 7
    %vm43 = vcmp.eq.s32.totalorder %v41, %v38
    %v44 = vld [vmem:[#allocation0] sm:$0xff]
    %v45 = vsel %vm43, %v44, 0.0
    %46 = vadd.xlane.f32.xlu0 %v45
    %v47 = vpop.xlane.xlu0 %46
    %vm48 = vcmp.ge.s32.totalorder %v41, %v38
    %vm49 = vmand %vm48, %vm39
    %v50 = vsel %vm49, %v44, 0.0
    %v51 = vrcp.pop %v47
    %v52 = vmul.f32 %v50, %v51
    %53 = vst [vmem:[#allocation4] sm:$0xff] %v52
    %v54 = vlaneseq
    %v55 = vand.u32 %v54, 127
    %v56 = vlaneseq
    %v57 = vshrl.u32 %v56, 7
    %vm59 = vcmp.eq.s32.totalorder %v55, %v57
    %v60 = vlaneseq
    %v61 = vand.u32 %v60, 127
    %vm62 = vcmp.eq.s32.totalorder %v61, 0
    %v63 = vsel %vm62, 1.0, -1.0
    %v64 = vsel %vm59, %v63, 0.0
    %s65 = scalar_lea.vmem [#allocation4], 1
    %v66 = vld [vmem:[%s65] ss:$0 sm:$0xff]
    %v67 = vxor.u32 %v66, 2147483648
    %v68 = vlaneseq
    %v69 = vand.u32 %v68, 127
    %vm70 = vcmp.eq.s32.totalorder %v69, 1
    %v71 = vmul.f32 %v67, %v64
    %72 = vadd.xlane.f32.xlu0 %v71
    %v73 = vpop.xlane.xlu0 %72
    %v74 = vsel %vm70, %v73, %v64
    %s75 = scalar_lea.vmem [#allocation4], 2
    %v76 = vld [vmem:[%s75] ss:$0 sm:$0xff]
    %v77 = vxor.u32 %v76, 2147483648
    %v78 = vlaneseq
    %v79 = vand.u32 %v78, 127
    %vm80 = vcmp.eq.s32.totalorder %v79, 2
    %v81 = vmul.f32 %v77, %v74
    %82 = vadd.xlane.f32.xlu0 %v81
    %v83 = vpop.xlane.xlu0 %82
    %v84 = vsel %vm80, %v83, %v74
    %v85 = vrcp.pop %v47
    %v86 = vmul.f32 %v84, %v85
    %vm87 = vweird.f32 %v47
    %v88 = vsel %vm87, %v84, %v86
    %89 = vst [vmem:[#allocation2] sm:$0xff] %v88
    %s91 = sshllo.u32 0, 4
    %v93 = vld [vmem:[#allocation2] sm:%s91]
    %s94 = sshllo.u32 0, 4
    %95 = vst [vmem:[#allocation3] sm:%s94] %v93
    // Predicated region
    $region32: #{custom-call.13} parent=1 // pred_check
      _
    $region33: #{custom-call.13} parent=1 // pred_check_branch
      %97 = sbr.rel (0) target = $region35
    $region34: #{custom-call.13} parent=1 // pred_region
      // Predicated region
      $region36: #{custom-call.13} parent=34 // pred_check
        _
      $region37: #{custom-call.13} parent=34 // pred_check_branch
        %99 = sbr.rel target = $region39
      $region38: #{custom-call.13} parent=34 // pred_region
        // Predicated region
        $region51: #{custom-call.13} parent=38 // pred_check
          _
        $region52: #{custom-call.13} parent=38 // pred_check_branch
          %114 = sbr.rel (0) target = $region54
        $region53: #{custom-call.13} parent=38 // pred_region
          loop: start=0, step=1, limit=1
          $region55: #{custom-call.13} parent=53 // loop_pre_header
            _
          $region56: #{custom-call.13} parent=53 // loop_header
            %s117 = sphi 0, %s121
            %p118 = scmp.ge.s32.totalorder %s117, 1
            %s122 = sphi [#allocation3], [#allocation3]
            %s123 = sphi %s1, %s1
          $region57: #{custom-call.13} parent=53 // loop_header_branch
            %120 = sbr.rel (%p118) target = $region61
          $region58: #{custom-call.13} parent=53 // loop_body
            %v124 = vld [vmem:[%s122] sm:$0xf]
            %125 = vst [vmem:[%s123] sm:$0xf] %v124
          $region59: #{custom-call.13} parent=53 // loop_footer
            %s121 = sadd.s32 1, %s117
          $region60: #{custom-call.13} parent=53 // loop_footer_branch
            %116 = sbr.rel target = $region56
          $region61: #{custom-call.13} parent=53 // loop_exit
            _
        $region54: #{custom-call.13} parent=38 // pred_fallthru
          _
      $region39: #{custom-call.13} parent=34 // pred_fallthru
        _
      // Predicated region
      $region40: #{custom-call.13} parent=34 // pred_check
        _
      $region41: #{custom-call.13} parent=34 // pred_check_branch
        %101 = sbr.rel (0) target = $region43
      $region42: #{custom-call.13} parent=34 // pred_region
        loop: start=0, step=1, limit=1
        $region44: #{custom-call.13} parent=42 // loop_pre_header
          _
        $region45: #{custom-call.13} parent=42 // loop_header
          %s104 = sphi 0, %s108
          %p105 = scmp.ge.s32.totalorder %s104, 1
          %s109 = sphi [#allocation3], [#allocation3]
          %s110 = sphi %s1, %s1
        $region46: #{custom-call.13} parent=42 // loop_header_branch
          %107 = sbr.rel (%p105) target = $region50
        $region47: #{custom-call.13} parent=42 // loop_body
          %v111 = vld [vmem:[%s109] sm:$0xf]
          %112 = vst [vmem:[%s110] sm:$0xf] %v111
        $region48: #{custom-call.13} parent=42 // loop_footer
          %s108 = sadd.s32 1, %s104
        $region49: #{custom-call.13} parent=42 // loop_footer_branch
          %103 = sbr.rel target = $region45
        $region50: #{custom-call.13} parent=42 // loop_exit
          _
      $region43: #{custom-call.13} parent=34 // pred_fallthru
        _
    $region35: #{custom-call.13} parent=1 // pred_fallthru
      _
    %126 = vnop

// kernel: custom-call.12
$region0: #{custom-call.12}
  %s0 = inlined_call_operand.vmem [shape: f32[1,3,3], index: 0, kind: input, shape index: {}]
  %s1 = inlined_call_operand.vmem [shape: f32[1,3,3], index: 1, kind: output, shape index: {}]
  $region1: #{custom-call.12} parent=0
    #allocation0 [shape = 'u8[4096]{0}', space=vmem, size = 0x1000, scoped, tag = 'operand span for operand 0']
    #allocation1 [shape = 'u8[2048]{0}', space=vmem, size = 0x800, scoped, tag = 'packed  for operand 0']
    #allocation2 [shape = 'u8[4096]{0}', space=vmem, size = 0x1000, scoped, tag = 'operand span for operand 1']
    #allocation3 [shape = 'u8[2048]{0}', space=vmem, size = 0x800, scoped, tag = 'packed  for operand 1']
    #allocation4 [shape = 'f32[3,3]{1,0}', space=vmem, size = 0x1000, scoped, tag = 'rescaled input a']
    // Predicated region
    $region2: #{custom-call.12} parent=1 // pred_check
      _
    $region3: #{custom-call.12} parent=1 // pred_check_branch
      %3 = sbr.rel (0) target = $region5
    $region4: #{custom-call.12} parent=1 // pred_region
      // Predicated region
      $region6: #{custom-call.12} parent=4 // pred_check
        _
      $region7: #{custom-call.12} parent=4 // pred_check_branch
        %5 = sbr.rel target = $region9
      $region8: #{custom-call.12} parent=4 // pred_region
        // Predicated region
        $region21: #{custom-call.12} parent=8 // pred_check
          _
        $region22: #{custom-call.12} parent=8 // pred_check_branch
          %20 = sbr.rel (0) target = $region24
        $region23: #{custom-call.12} parent=8 // pred_region
          loop: start=0, step=1, limit=1
          $region25: #{custom-call.12} parent=23 // loop_pre_header
            _
          $region26: #{custom-call.12} parent=23 // loop_header
            %s23 = sphi 0, %s27
            %p24 = scmp.ge.s32.totalorder %s23, 1
            %s28 = sphi %s0, %s0
            %s29 = sphi [#allocation1], [#allocation1]
          $region27: #{custom-call.12} parent=23 // loop_header_branch
            %26 = sbr.rel (%p24) target = $region31
          $region28: #{custom-call.12} parent=23 // loop_body
            %v30 = vld [vmem:[%s28] sm:$0xf]
            %31 = vst [vmem:[%s29] sm:$0xf] %v30
          $region29: #{custom-call.12} parent=23 // loop_footer
            %s27 = sadd.s32 1, %s23
          $region30: #{custom-call.12} parent=23 // loop_footer_branch
            %22 = sbr.rel target = $region26
          $region31: #{custom-call.12} parent=23 // loop_exit
            _
        $region24: #{custom-call.12} parent=8 // pred_fallthru
          _
      $region9: #{custom-call.12} parent=4 // pred_fallthru
        _
      // Predicated region
      $region10: #{custom-call.12} parent=4 // pred_check
        _
      $region11: #{custom-call.12} parent=4 // pred_check_branch
        %7 = sbr.rel (0) target = $region13
      $region12: #{custom-call.12} parent=4 // pred_region
        loop: start=0, step=1, limit=1
        $region14: #{custom-call.12} parent=12 // loop_pre_header
          _
        $region15: #{custom-call.12} parent=12 // loop_header
          %s10 = sphi 0, %s14
          %p11 = scmp.ge.s32.totalorder %s10, 1
          %s15 = sphi %s0, %s0
          %s16 = sphi [#allocation1], [#allocation1]
        $region16: #{custom-call.12} parent=12 // loop_header_branch
          %13 = sbr.rel (%p11) target = $region20
        $region17: #{custom-call.12} parent=12 // loop_body
          %v17 = vld [vmem:[%s15] sm:$0xf]
          %18 = vst [vmem:[%s16] sm:$0xf] %v17
        $region18: #{custom-call.12} parent=12 // loop_footer
          %s14 = sadd.s32 1, %s10
        $region19: #{custom-call.12} parent=12 // loop_footer_branch
          %9 = sbr.rel target = $region15
        $region20: #{custom-call.12} parent=12 // loop_exit
          _
      $region13: #{custom-call.12} parent=4 // pred_fallthru
        _
    $region5: #{custom-call.12} parent=1 // pred_fallthru
      _
    %32 = vnop
    %s34 = sshllo.u32 0, 4
    %v35 = vld [vmem:[#allocation1] sm:%s34]
    %36 = vst [vmem:[#allocation0] sm:%s34] %v35
    %v37 = vlaneseq
    %v38 = vand.u32 %v37, 127
    %vm39 = vcmp.lt.s32.totalorder %v38, 3
    %v40 = vlaneseq
    %v41 = vshrl.u32 %v40, 7
    %vm43 = vcmp.eq.s32.totalorder %v41, %v38
    %v44 = vld [vmem:[#allocation0] sm:$0xff]
    %v45 = vsel %vm43, %v44, 0.0
    %46 = vadd.xlane.f32.xlu0 %v45
    %v47 = vpop.xlane.xlu0 %46
    %vm48 = vcmp.le.s32.totalorder %v41, %v38
    %vm49 = vmand %vm48, %vm39
    %v50 = vsel %vm49, %v44, 0.0
    %v51 = vrcp.pop %v47
    %v52 = vmul.f32 %v50, %v51
    %53 = vst [vmem:[#allocation4] sm:$0xff] %v52
    %v54 = vlaneseq
    %v55 = vand.u32 %v54, 127
    %v56 = vlaneseq
    %v57 = vshrl.u32 %v56, 7
    %vm59 = vcmp.eq.s32.totalorder %v55, %v57
    %v60 = vlaneseq
    %v61 = vand.u32 %v60, 127
    %vm62 = vcmp.eq.s32.totalorder %v61, 2
    %v63 = vsel %vm62, 1.0, -1.0
    %v64 = vsel %vm59, %v63, 0.0
    %s65 = scalar_lea.vmem [#allocation4], 1
    %v66 = vld [vmem:[%s65] ss:$0 sm:$0xff]
    %v67 = vxor.u32 %v66, 2147483648
    %v68 = vlaneseq
    %v69 = vand.u32 %v68, 127
    %vm70 = vcmp.eq.s32.totalorder %v69, 1
    %v71 = vmul.f32 %v67, %v64
    %72 = vadd.xlane.f32.xlu0 %v71
    %v73 = vpop.xlane.xlu0 %72
    %v74 = vsel %vm70, %v73, %v64
    %v75 = vld [vmem:[#allocation4] ss:$0 sm:$0xff]
    %v76 = vxor.u32 %v75, 2147483648
    %v77 = vlaneseq
    %v78 = vand.u32 %v77, 127
    %vm79 = vcmp.eq.s32.totalorder %v78, 0
    %v80 = vmul.f32 %v76, %v74
    %81 = vadd.xlane.f32.xlu0 %v80
    %v82 = vpop.xlane.xlu0 %81
    %v83 = vsel %vm79, %v82, %v74
    %v84 = vrcp.pop %v47
    %v85 = vmul.f32 %v83, %v84
    %vm86 = vweird.f32 %v47
    %v87 = vsel %vm86, %v83, %v85
    %88 = vst [vmem:[#allocation2] sm:$0xff] %v87
    %s90 = sshllo.u32 0, 4
    %v92 = vld [vmem:[#allocation2] sm:%s90]
    %s93 = sshllo.u32 0, 4
    %94 = vst [vmem:[#allocation3] sm:%s93] %v92
    // Predicated region
    $region32: #{custom-call.12} parent=1 // pred_check
      _
    $region33: #{custom-call.12} parent=1 // pred_check_branch
      %96 = sbr.rel (0) target = $region35
    $region34: #{custom-call.12} parent=1 // pred_region
      // Predicated region
      $region36: #{custom-call.12} parent=34 // pred_check
        _
      $region37: #{custom-call.12} parent=34 // pred_check_branch
        %98 = sbr.rel target = $region39
      $region38: #{custom-call.12} parent=34 // pred_region
        // Predicated region
        $region51: #{custom-call.12} parent=38 // pred_check
          _
        $region52: #{custom-call.12} parent=38 // pred_check_branch
          %113 = sbr.rel (0) target = $region54
        $region53: #{custom-call.12} parent=38 // pred_region
          loop: start=0, step=1, limit=1
          $region55: #{custom-call.12} parent=53 // loop_pre_header
            _
          $region56: #{custom-call.12} parent=53 // loop_header
            %s116 = sphi 0, %s120
            %p117 = scmp.ge.s32.totalorder %s116, 1
            %s121 = sphi [#allocation3], [#allocation3]
            %s122 = sphi %s1, %s1
          $region57: #{custom-call.12} parent=53 // loop_header_branch
            %119 = sbr.rel (%p117) target = $region61
          $region58: #{custom-call.12} parent=53 // loop_body
            %v123 = vld [vmem:[%s121] sm:$0xf]
            %124 = vst [vmem:[%s122] sm:$0xf] %v123
          $region59: #{custom-call.12} parent=53 // loop_footer
            %s120 = sadd.s32 1, %s116
          $region60: #{custom-call.12} parent=53 // loop_footer_branch
            %115 = sbr.rel target = $region56
          $region61: #{custom-call.12} parent=53 // loop_exit
            _
        $region54: #{custom-call.12} parent=38 // pred_fallthru
          _
      $region39: #{custom-call.12} parent=34 // pred_fallthru
        _
      // Predicated region
      $region40: #{custom-call.12} parent=34 // pred_check
        _
      $region41: #{custom-call.12} parent=34 // pred_check_branch
        %100 = sbr.rel (0) target = $region43
      $region42: #{custom-call.12} parent=34 // pred_region
        loop: start=0, step=1, limit=1
        $region44: #{custom-call.12} parent=42 // loop_pre_header
          _
        $region45: #{custom-call.12} parent=42 // loop_header
          %s103 = sphi 0, %s107
          %p104 = scmp.ge.s32.totalorder %s103, 1
          %s108 = sphi [#allocation3], [#allocation3]
          %s109 = sphi %s1, %s1
        $region46: #{custom-call.12} parent=42 // loop_header_branch
          %106 = sbr.rel (%p104) target = $region50
        $region47: #{custom-call.12} parent=42 // loop_body
          %v110 = vld [vmem:[%s108] sm:$0xf]
          %111 = vst [vmem:[%s109] sm:$0xf] %v110
        $region48: #{custom-call.12} parent=42 // loop_footer
          %s107 = sadd.s32 1, %s103
        $region49: #{custom-call.12} parent=42 // loop_footer_branch
          %102 = sbr.rel target = $region45
        $region50: #{custom-call.12} parent=42 // loop_exit
          _
      $region43: #{custom-call.12} parent=34 // pred_fallthru
        _
    $region35: #{custom-call.12} parent=1 // pred_fallthru
      _
    %125 = vnop

// kernel: _batch_forward.1
$region0: #{_batch_forward.1}
  #allocation0 [shape = 'u32[]', space=smem, size = 0x4, offset = 0x4, fixed_abs, tag = 'smem constant byte address 0x4 - core index']
  #allocation1 [shape = 'u32[144,128]{1,0:T(1,128)}', space=vmem, size = 0x12000, scoped, tag = 'internal scratch']
  #allocation2 [shape = 'f32[1]{0:T(128)S(6)}', space=smem, size = 0x200, scoped, tag = 'scoped memory for _batch_forward.1']
  %s0 = inlined_call_operand.vmem [shape: bf16[2,32,256], index: 0, kind: input, shape index: {}]
  %s1 = inlined_call_operand.vmem [shape: bf16[2,2,32,256], index: 1, kind: input, shape index: {}]
  %s2 = inlined_call_operand.vmem [shape: bf16[32,32], index: 2, kind: input, shape index: {}]
  %s3 = inlined_call_operand.vmem [shape: bf16[32,32], index: 3, kind: input, shape index: {}]
  %s4 = inlined_call_operand.vmem [shape: f32[32,1], index: 4, kind: input, shape index: {}]
  %s5 = inlined_call_operand.vmem [shape: bf16[16,32], index: 5, kind: input, shape index: {}]
  %s6 = inlined_call_operand.vmem [shape: f32[16,1], index: 6, kind: input, shape index: {}]
  %s7 = inlined_call_operand.vmem [shape: bf16[8,16], index: 7, kind: input, shape index: {}]
  %s8 = inlined_call_operand.vmem [shape: f32[8,1], index: 8, kind: input, shape index: {}]
  %s9 = inlined_call_operand.vmem [shape: f32[8,1], index: 9, kind: input, shape index: {}]
  %s10 = inlined_call_operand.<no memory space> [shape: f32[1], index: 10, kind: input, shape index: {}]
  %s11 = inlined_call_operand.vmem [shape: f32[2,32,256], index: 11, kind: output, shape index: {}]
  %s12 = sld [smem:[#allocation0]]
  $region193: #{_batch_forward.1} parent=0
    _
  %s14 = ssub.s32 1, %s12
  %s15 = scalar_select 0, %s14, %s12
  %16 = sst [smem:[#allocation2]] %s10
  $region1: #{_batch_forward.1} parent=0
    #allocation3 [shape = 'u8[16384]{0}', space=vmem, size = 0x4000, scoped, tag = 'input window, operand 0']
    #allocation4 [shape = 'u8[32768]{0}', space=vmem, size = 0x8000, scoped, tag = 'input window, operand 1']
    #allocation5 [shape = 'u8[32768]{0}', space=vmem, size = 0x8000, scoped, tag = 'output window, operand 0']
    loop: start=0, step=1, limit=6
    $region2: #{_batch_forward.1} parent=1 // loop_pre_header
      _
    $region3: #{_batch_forward.1} parent=1 // loop_header
      %s18 = sphi 0, %s22
      %p19 = scmp.ge.s32.totalorder %s18, 6
      %s25 = sphi 0, %s37
      %s26 = sphi 0, %s33
      %s27 = sphi 0, %s25
      %s28 = sphi 0, %s26
      %s29 = sphi 0, %s27
      %s30 = sphi 0, %s28
      %s42 = sphi 0, %s44
      %s45 = sphi 0, %s42
      %s46 = sphi 0, %s45
      %s62 = sphi 0, %s46
      %s70 = sphi 0, %s72
      %s73 = sphi 0, %s70
      %s74 = sphi 0, %s73
      %s90 = sphi 0, %s74
      %s94 = sphi 0, %s94
      %s96 = sphi 0, %s94
      %s97 = sphi 0, %s96
      %s111 = sphi 0, %s97
      %s115 = sphi 0, %s115
      %s117 = sphi 0, %s115
      %s118 = sphi 0, %s117
      %s132 = sphi 0, %s118
      %s136 = sphi 0, %s136
      %s138 = sphi 0, %s136
      %s139 = sphi 0, %s138
      %s153 = sphi 0, %s139
      %s157 = sphi 0, %s157
      %s159 = sphi 0, %s157
      %s160 = sphi 0, %s159
      %s174 = sphi 0, %s160
      %s178 = sphi 0, %s178
      %s180 = sphi 0, %s178
      %s181 = sphi 0, %s180
      %s195 = sphi 0, %s181
      %s199 = sphi 0, %s199
      %s201 = sphi 0, %s199
      %s202 = sphi 0, %s201
      %s216 = sphi 0, %s202
      %s220 = sphi 0, %s220
      %s222 = sphi 0, %s220
      %s223 = sphi 0, %s222
      %s237 = sphi 0, %s223
      %s241 = sphi 0, %s241
      %s243 = sphi 0, %s241
      %s244 = sphi 0, %s243
      %s258 = sphi 0, %s244
      %s262 = sphi 0, %s262
      %s264 = sphi 0, %s262
      %s265 = sphi 0, %s264
      %s279 = sphi 0, %s265
      %s287 = sphi 0, %s289
      %s290 = sphi 0, %s287
      %s291 = sphi 0, %s290
      %s307 = sphi 0, %s291
    $region4: #{_batch_forward.1} parent=1 // loop_header_branch
      %21 = sbr.rel (%p19) target = $region8
    $region5: #{_batch_forward.1} parent=1 // loop_body
      %s23 = ssub.s32 %s18, 1
      %s24 = ssub.s32 %s18, 2
      %s31 = sadd.s32 1, %s26
      %p32 = scmp.ge.s32.totalorder %s31, 2
      %s33 = scalar_select %p32, 0, %s31
      %s34 = sadd.s32 1, %s25
      %s35 = scalar_select %p32, %s34, %s25
      %p36 = scmp.ge.s32.totalorder %s35, 2
      %s37 = scalar_select %p36, 0, %s35
      %s38 = ssub.s32 %s25, %s37
      %s39 = ssub.s32 %s26, %s33
      %s40 = sor.u32 %s38, %s39
      %p41 = scmp.eq.s32.totalorder %s40, 0
      %s43 = sadd.s32 %s42, 1
      %s44 = scalar_select %p41, %s42, %s43
      %p47 = pneg %p41
      %p48 = scmp.eq.s32.totalorder %s18, 3
      %p49 = por %p47, %p48
      %p50 = scmp.ne.s32.totalorder %s42, %s45
      %p51 = scmp.eq.s32.totalorder %s18, 0
      %p52 = por %p50, %p51
      %p53 = scmp.ne.s32.totalorder %s42, %s45
      %p54 = scmp.eq.s32.totalorder %s23, 3
      %p55 = por %p53, %p54
      %p56 = scmp.ne.s32.totalorder %s45, %s46
      %p57 = scmp.eq.s32.totalorder %s23, 0
      %p58 = por %p56, %p57
      %p59 = scmp.ne.s32.totalorder %s45, %s46
      %p60 = scmp.eq.s32.totalorder %s24, 3
      %p61 = por %p59, %p60
      %p63 = scmp.ne.s32.totalorder %s46, %s62
      %p64 = scmp.eq.s32.totalorder %s24, 0
      %p65 = por %p63, %p64
      %s66 = ssub.s32 %s25, %s37
      %s67 = ssub.s32 %s26, %s33
      %s68 = sor.u32 %s66, %s67
      %p69 = scmp.eq.s32.totalorder %s68, 0
      %s71 = sadd.s32 %s70, 1
      %s72 = scalar_select %p69, %s70, %s71
      %p75 = pneg %p69
      %p76 = scmp.eq.s32.totalorder %s18, 3
      %p77 = por %p75, %p76
      %p78 = scmp.ne.s32.totalorder %s70, %s73
      %p79 = scmp.eq.s32.totalorder %s18, 0
      %p80 = por %p78, %p79
      %p81 = scmp.ne.s32.totalorder %s70, %s73
      %p82 = scmp.eq.s32.totalorder %s23, 3
      %p83 = por %p81, %p82
      %p84 = scmp.ne.s32.totalorder %s73, %s74
      %p85 = scmp.eq.s32.totalorder %s23, 0
      %p86 = por %p84, %p85
      %p87 = scmp.ne.s32.totalorder %s73, %s74
      %p88 = scmp.eq.s32.totalorder %s24, 3
      %p89 = por %p87, %p88
      %p91 = scmp.ne.s32.totalorder %s74, %s90
      %p92 = scmp.eq.s32.totalorder %s24, 0
      %p93 = por %p91, %p92
      %s95 = sadd.s32 %s94, 1
      %p98 = scmp.eq.s32.totalorder %s18, 3
      %p99 = scmp.ne.s32.totalorder %s94, %s96
      %p100 = scmp.eq.s32.totalorder %s18, 0
      %p101 = por %p99, %p100
      %p102 = scmp.ne.s32.totalorder %s94, %s96
      %p103 = scmp.eq.s32.totalorder %s23, 3
      %p104 = por %p102, %p103
      %p105 = scmp.ne.s32.totalorder %s96, %s97
      %p106 = scmp.eq.s32.totalorder %s23, 0
      %p107 = por %p105, %p106
      %p108 = scmp.ne.s32.totalorder %s96, %s97
      %p109 = scmp.eq.s32.totalorder %s24, 3
      %p110 = por %p108, %p109
      %p112 = scmp.ne.s32.totalorder %s97, %s111
      %p113 = scmp.eq.s32.totalorder %s24, 0
      %p114 = por %p112, %p113
      %s116 = sadd.s32 %s115, 1
      %p119 = scmp.eq.s32.totalorder %s18, 3
      %p120 = scmp.ne.s32.totalorder %s115, %s117
      %p121 = scmp.eq.s32.totalorder %s18, 0
      %p122 = por %p120, %p121
      %p123 = scmp.ne.s32.totalorder %s115, %s117
      %p124 = scmp.eq.s32.totalorder %s23, 3
      %p125 = por %p123, %p124
      %p126 = scmp.ne.s32.totalorder %s117, %s118
      %p127 = scmp.eq.s32.totalorder %s23, 0
      %p128 = por %p126, %p127
      %p129 = scmp.ne.s32.totalorder %s117, %s118
      %p130 = scmp.eq.s32.totalorder %s24, 3
      %p131 = por %p129, %p130
      %p133 = scmp.ne.s32.totalorder %s118, %s132
      %p134 = scmp.eq.s32.totalorder %s24, 0
      %p135 = por %p133, %p134
      %s137 = sadd.s32 %s136, 1
      %p140 = scmp.eq.s32.totalorder %s18, 3
      %p141 = scmp.ne.s32.totalorder %s136, %s138
      %p142 = scmp.eq.s32.totalorder %s18, 0
      %p143 = por %p141, %p142
      %p144 = scmp.ne.s32.totalorder %s136, %s138
      %p145 = scmp.eq.s32.totalorder %s23, 3
      %p146 = por %p144, %p145
      %p147 = scmp.ne.s32.totalorder %s138, %s139
      %p148 = scmp.eq.s32.totalorder %s23, 0
      %p149 = por %p147, %p148
      %p150 = scmp.ne.s32.totalorder %s138, %s139
      %p151 = scmp.eq.s32.totalorder %s24, 3
      %p152 = por %p150, %p151
      %p154 = scmp.ne.s32.totalorder %s139, %s153
      %p155 = scmp.eq.s32.totalorder %s24, 0
      %p156 = por %p154, %p155
      %s158 = sadd.s32 %s157, 1
      %p161 = scmp.eq.s32.totalorder %s18, 3
      %p162 = scmp.ne.s32.totalorder %s157, %s159
      %p163 = scmp.eq.s32.totalorder %s18, 0
      %p164 = por %p162, %p163
      %p165 = scmp.ne.s32.totalorder %s157, %s159
      %p166 = scmp.eq.s32.totalorder %s23, 3
      %p167 = por %p165, %p166
      %p168 = scmp.ne.s32.totalorder %s159, %s160
      %p169 = scmp.eq.s32.totalorder %s23, 0
      %p170 = por %p168, %p169
      %p171 = scmp.ne.s32.totalorder %s159, %s160
      %p172 = scmp.eq.s32.totalorder %s24, 3
      %p173 = por %p171, %p172
      %p175 = scmp.ne.s32.totalorder %s160, %s174
      %p176 = scmp.eq.s32.totalorder %s24, 0
      %p177 = por %p175, %p176
      %s179 = sadd.s32 %s178, 1
      %p182 = scmp.eq.s32.totalorder %s18, 3
      %p183 = scmp.ne.s32.totalorder %s178, %s180
      %p184 = scmp.eq.s32.totalorder %s18, 0
      %p185 = por %p183, %p184
      %p186 = scmp.ne.s32.totalorder %s178, %s180
      %p187 = scmp.eq.s32.totalorder %s23, 3
      %p188 = por %p186, %p187
      %p189 = scmp.ne.s32.totalorder %s180, %s181
      %p190 = scmp.eq.s32.totalorder %s23, 0
      %p191 = por %p189, %p190
      %p192 = scmp.ne.s32.totalorder %s180, %s181
      %p193 = scmp.eq.s32.totalorder %s24, 3
      %p194 = por %p192, %p193
      %p196 = scmp.ne.s32.totalorder %s181, %s195
      %p197 = scmp.eq.s32.totalorder %s24, 0
      %p198 = por %p196, %p197
      %s200 = sadd.s32 %s199, 1
      %p203 = scmp.eq.s32.totalorder %s18, 3
      %p204 = scmp.ne.s32.totalorder %s199, %s201
      %p205 = scmp.eq.s32.totalorder %s18, 0
      %p206 = por %p204, %p205
      %p207 = scmp.ne.s32.totalorder %s199, %s201
      %p208 = scmp.eq.s32.totalorder %s23, 3
      %p209 = por %p207, %p208
      %p210 = scmp.ne.s32.totalorder %s201, %s202
      %p211 = scmp.eq.s32.totalorder %s23, 0
      %p212 = por %p210, %p211
      %p213 = scmp.ne.s32.totalorder %s201, %s202
      %p214 = scmp.eq.s32.totalorder %s24, 3
      %p215 = por %p213, %p214
      %p217 = scmp.ne.s32.totalorder %s202, %s216
      %p218 = scmp.eq.s32.totalorder %s24, 0
      %p219 = por %p217, %p218
      %s221 = sadd.s32 %s220, 1
      %p224 = scmp.eq.s32.totalorder %s18, 3
      %p225 = scmp.ne.s32.totalorder %s220, %s222
      %p226 = scmp.eq.s32.totalorder %s18, 0
      %p227 = por %p225, %p226
      %p228 = scmp.ne.s32.totalorder %s220, %s222
      %p229 = scmp.eq.s32.totalorder %s23, 3
      %p230 = por %p228, %p229
      %p231 = scmp.ne.s32.totalorder %s222, %s223
      %p232 = scmp.eq.s32.totalorder %s23, 0
      %p233 = por %p231, %p232
      %p234 = scmp.ne.s32.totalorder %s222, %s223
      %p235 = scmp.eq.s32.totalorder %s24, 3
      %p236 = por %p234, %p235
      %p238 = scmp.ne.s32.totalorder %s223, %s237
      %p239 = scmp.eq.s32.totalorder %s24, 0
      %p240 = por %p238, %p239
      %s242 = sadd.s32 %s241, 1
      %p245 = scmp.eq.s32.totalorder %s18, 3
      %p246 = scmp.ne.s32.totalorder %s241, %s243
      %p247 = scmp.eq.s32.totalorder %s18, 0
      %p248 = por %p246, %p247
      %p249 = scmp.ne.s32.totalorder %s241, %s243
      %p250 = scmp.eq.s32.totalorder %s23, 3
      %p251 = por %p249, %p250
      %p252 = scmp.ne.s32.totalorder %s243, %s244
      %p253 = scmp.eq.s32.totalorder %s23, 0
      %p254 = por %p252, %p253
      %p255 = scmp.ne.s32.totalorder %s243, %s244
      %p256 = scmp.eq.s32.totalorder %s24, 3
      %p257 = por %p255, %p256
      %p259 = scmp.ne.s32.totalorder %s244, %s258
      %p260 = scmp.eq.s32.totalorder %s24, 0
      %p261 = por %p259, %p260
      %s263 = sadd.s32 %s262, 1
      %p266 = scmp.eq.s32.totalorder %s18, 3
      %p267 = scmp.ne.s32.totalorder %s262, %s264
      %p268 = scmp.eq.s32.totalorder %s18, 0
      %p269 = por %p267, %p268
      %p270 = scmp.ne.s32.totalorder %s262, %s264
      %p271 = scmp.eq.s32.totalorder %s23, 3
      %p272 = por %p270, %p271
      %p273 = scmp.ne.s32.totalorder %s264, %s265
      %p274 = scmp.eq.s32.totalorder %s23, 0
      %p275 = por %p273, %p274
      %p276 = scmp.ne.s32.totalorder %s264, %s265
      %p277 = scmp.eq.s32.totalorder %s24, 3
      %p278 = por %p276, %p277
      %p280 = scmp.ne.s32.totalorder %s265, %s279
      %p281 = scmp.eq.s32.totalorder %s24, 0
      %p282 = por %p280, %p281
      %s283 = ssub.s32 %s25, %s37
      %s284 = ssub.s32 %s26, %s33
      %s285 = sor.u32 %s283, %s284
      %p286 = scmp.eq.s32.totalorder %s285, 0
      %s288 = sadd.s32 %s287, 1
      %s289 = scalar_select %p286, %s287, %s288
      %p292 = pneg %p286
      %p293 = scmp.eq.s32.totalorder %s18, 3
      %p294 = por %p292, %p293
      %p295 = scmp.ne.s32.totalorder %s287, %s290
      %p296 = scmp.eq.s32.totalorder %s18, 0
      %p297 = por %p295, %p296
      %p298 = scmp.ne.s32.totalorder %s287, %s290
      %p299 = scmp.eq.s32.totalorder %s23, 3
      %p300 = por %p298, %p299
      %p301 = scmp.ne.s32.totalorder %s290, %s291
      %p302 = scmp.eq.s32.totalorder %s23, 0
      %p303 = por %p301, %p302
      %p304 = scmp.ne.s32.totalorder %s290, %s291
      %p305 = scmp.eq.s32.totalorder %s24, 3
      %p306 = por %p304, %p305
      %p308 = scmp.ne.s32.totalorder %s291, %s307
      %p309 = scmp.eq.s32.totalorder %s24, 0
      %p310 = por %p308, %p309
      %p311 = scmp.le.s32.totalorder 1, %s18
      %p312 = scmp.lt.s32.totalorder %s18, 5
      %p313 = pnand %p311, %p312
      %p314 = pneg %p313
      // Predicated region
      $region9: #{_batch_forward.1} parent=5 // pred_check
        _
      $region10: #{_batch_forward.1} parent=5 // pred_check_branch
        %316 = sbr.rel (%p313) target = $region12
      $region11: #{_batch_forward.1} parent=5 // pred_region
        %s317 = ssub.s32 %s18, 1
        // Predicated region
        $region13: #{_batch_forward.1} parent=11 // pred_check
          %p318 = pneg %p107
        $region14: #{_batch_forward.1} parent=11 // pred_check_branch
          %320 = sbr.rel (%p318) target = $region16
        $region15: #{_batch_forward.1} parent=11 // pred_region
          _
        $region16: #{_batch_forward.1} parent=11 // pred_fallthru
          _
        // Predicated region
        $region17: #{_batch_forward.1} parent=11 // pred_check
          %p321 = pneg %p128
        $region18: #{_batch_forward.1} parent=11 // pred_check_branch
          %323 = sbr.rel (%p321) target = $region20
        $region19: #{_batch_forward.1} parent=11 // pred_region
          _
        $region20: #{_batch_forward.1} parent=11 // pred_fallthru
          _
        // Predicated region
        $region21: #{_batch_forward.1} parent=11 // pred_check
          %p324 = pneg %p149
        $region22: #{_batch_forward.1} parent=11 // pred_check_branch
          %326 = sbr.rel (%p324) target = $region24
        $region23: #{_batch_forward.1} parent=11 // pred_region
          _
        $region24: #{_batch_forward.1} parent=11 // pred_fallthru
          _
        // Predicated region
        $region25: #{_batch_forward.1} parent=11 // pred_check
          %p327 = pneg %p170
        $region26: #{_batch_forward.1} parent=11 // pred_check_branch
          %329 = sbr.rel (%p327) target = $region28
        $region27: #{_batch_forward.1} parent=11 // pred_region
          _
        $region28: #{_batch_forward.1} parent=11 // pred_fallthru
          _
        // Predicated region
        $region29: #{_batch_forward.1} parent=11 // pred_check
          %p330 = pneg %p191
        $region30: #{_batch_forward.1} parent=11 // pred_check_branch
          %332 = sbr.rel (%p330) target = $region32
        $region31: #{_batch_forward.1} parent=11 // pred_region
          _
        $region32: #{_batch_forward.1} parent=11 // pred_fallthru
          _
        // Predicated region
        $region33: #{_batch_forward.1} parent=11 // pred_check
          %p333 = pneg %p212
        $region34: #{_batch_forward.1} parent=11 // pred_check_branch
          %335 = sbr.rel (%p333) target = $region36
        $region35: #{_batch_forward.1} parent=11 // pred_region
          _
        $region36: #{_batch_forward.1} parent=11 // pred_fallthru
          _
        // Predicated region
        $region37: #{_batch_forward.1} parent=11 // pred_check
          %p336 = pneg %p233
        $region38: #{_batch_forward.1} parent=11 // pred_check_branch
          %338 = sbr.rel (%p336) target = $region40
        $region39: #{_batch_forward.1} parent=11 // pred_region
          _
        $region40: #{_batch_forward.1} parent=11 // pred_fallthru
          _
        // Predicated region
        $region41: #{_batch_forward.1} parent=11 // pred_check
          %p339 = pneg %p254
        $region42: #{_batch_forward.1} parent=11 // pred_check_branch
          %341 = sbr.rel (%p339) target = $region44
        $region43: #{_batch_forward.1} parent=11 // pred_region
          _
        $region44: #{_batch_forward.1} parent=11 // pred_fallthru
          _
        // Predicated region
        $region45: #{_batch_forward.1} parent=11 // pred_check
          %p342 = pneg %p275
        $region46: #{_batch_forward.1} parent=11 // pred_check_branch
          %344 = sbr.rel (%p342) target = $region48
        $region47: #{_batch_forward.1} parent=11 // pred_region
          _
        $region48: #{_batch_forward.1} parent=11 // pred_fallthru
          _
      $region12: #{_batch_forward.1} parent=5 // pred_fallthru
        _
      %p345 = scmp.lt.s32.totalorder %s18, 4
      // Predicated region
      $region49: #{_batch_forward.1} parent=5 // pred_check
        %p346 = pneg %p345
      $region50: #{_batch_forward.1} parent=5 // pred_check_branch
        %348 = sbr.rel (%p346) target = $region52
      $region51: #{_batch_forward.1} parent=5 // pred_region
        // Predicated region
        $region53: #{_batch_forward.1} parent=51 // pred_check
          %p349 = pneg %p52
        $region54: #{_batch_forward.1} parent=51 // pred_check_branch
          %351 = sbr.rel (%p349) target = $region56
        $region55: #{_batch_forward.1} parent=51 // pred_region
          %s352 = sand.u32 %s42, 1
          %s353 = sand.u32 %s42, 1
          %s354 = smul.addr %s353, 16
          %s355 = scalar_lea.vmem [#allocation3], %s354
          %s356 = smul.addr %s25, 8
          %s357 = sadd.s32 %s26, %s356
          %s358 = smul.addr %s357, 4
          %s359 = scalar_lea.vmem %s0, %s358
          // Predicated region
          $region57: #{_batch_forward.1} parent=55 // pred_check
            _
          $region58: #{_batch_forward.1} parent=55 // pred_check_branch
            %361 = sbr.rel (0) target = $region60
          $region59: #{_batch_forward.1} parent=55 // pred_region
            // Predicated region
            $region61: #{_batch_forward.1} parent=59 // pred_check
              _
            $region62: #{_batch_forward.1} parent=59 // pred_check_branch
              %363 = sbr.rel target = $region64
            $region63: #{_batch_forward.1} parent=59 // pred_region
              // Predicated region
              $region76: #{_batch_forward.1} parent=63 // pred_check
                _
              $region77: #{_batch_forward.1} parent=63 // pred_check_branch
                %384 = sbr.rel (0) target = $region79
              $region78: #{_batch_forward.1} parent=63 // pred_region
                loop: start=0, step=1, limit=1
                $region80: #{_batch_forward.1} parent=78 // loop_pre_header
                  _
                $region81: #{_batch_forward.1} parent=78 // loop_header
                  %s386 = sphi 0, %s390
                  %p387 = scmp.ge.s32.totalorder %s386, 1
                  %s391 = sphi %s359, %s359
                  %s392 = sphi %s355, %s355
                $region82: #{_batch_forward.1} parent=78 // loop_header_branch
                  %389 = sbr.rel (%p387) target = $region86
                $region83: #{_batch_forward.1} parent=78 // loop_body
                  _
                $region84: #{_batch_forward.1} parent=78 // loop_footer
                  %s390 = sadd.s32 1, %s386
                $region85: #{_batch_forward.1} parent=78 // loop_footer_branch
                  %385 = sbr.rel target = $region81
                $region86: #{_batch_forward.1} parent=78 // loop_exit
                  _
                loop: start=0, step=1, limit=1
                $region87: #{_batch_forward.1} parent=78 // loop_pre_header
                  _
                $region88: #{_batch_forward.1} parent=78 // loop_header
                  %s395 = sphi 0, %s399
                  %p396 = scmp.ge.s32.totalorder %s395, 1
                  %s400 = sphi %s359, %s359
                  %s401 = sphi %s355, %s355
                $region89: #{_batch_forward.1} parent=78 // loop_header_branch
                  %398 = sbr.rel (%p396) target = $region93
                $region90: #{_batch_forward.1} parent=78 // loop_body
                  %v402 = vld [vmem:[%s400] sm:$0xf]
                  %403 = vst [vmem:[%s401] sm:$0xf] %v402
                  %v404 = vld [vmem:[%s400 + $0x8] sm:$0xf]
                  %405 = vst [vmem:[%s401 + $0x4] sm:$0xf] %v404
                  %v406 = vld [vmem:[%s400 + $0x10] sm:$0xf]
                  %407 = vst [vmem:[%s401 + $0x8] sm:$0xf] %v406
                  %v408 = vld [vmem:[%s400 + $0x18] sm:$0xf]
                  %409 = vst [vmem:[%s401 + $0xc] sm:$0xf] %v408
                $region91: #{_batch_forward.1} parent=78 // loop_footer
                  %s399 = sadd.s32 1, %s395
                $region92: #{_batch_forward.1} parent=78 // loop_footer_branch
                  %394 = sbr.rel target = $region88
                $region93: #{_batch_forward.1} parent=78 // loop_exit
                  _
              $region79: #{_batch_forward.1} parent=63 // pred_fallthru
                _
            $region64: #{_batch_forward.1} parent=59 // pred_fallthru
              _
            // Predicated region
            $region65: #{_batch_forward.1} parent=59 // pred_check
              _
            $region66: #{_batch_forward.1} parent=59 // pred_check_branch
              %365 = sbr.rel (0) target = $region68
            $region67: #{_batch_forward.1} parent=59 // pred_region
              loop: start=0, step=1, limit=1
              $region69: #{_batch_forward.1} parent=67 // loop_pre_header
                _
              $region70: #{_batch_forward.1} parent=67 // loop_header
                %s368 = sphi 0, %s372
                %p369 = scmp.ge.s32.totalorder %s368, 1
                %s373 = sphi %s359, %s359
                %s374 = sphi %s355, %s355
              $region71: #{_batch_forward.1} parent=67 // loop_header_branch
                %371 = sbr.rel (%p369) target = $region75
              $region72: #{_batch_forward.1} parent=67 // loop_body
                %v375 = vld [vmem:[%s373] sm:$0xf]
                %376 = vst [vmem:[%s374] sm:$0xf] %v375
                %v377 = vld [vmem:[%s373 + $0x8] sm:$0xf]
                %378 = vst [vmem:[%s374 + $0x4] sm:$0xf] %v377
                %v379 = vld [vmem:[%s373 + $0x10] sm:$0xf]
                %380 = vst [vmem:[%s374 + $0x8] sm:$0xf] %v379
                %v381 = vld [vmem:[%s373 + $0x18] sm:$0xf]
                %382 = vst [vmem:[%s374 + $0xc] sm:$0xf] %v381
              $region73: #{_batch_forward.1} parent=67 // loop_footer
                %s372 = sadd.s32 1, %s368
              $region74: #{_batch_forward.1} parent=67 // loop_footer_branch
                %367 = sbr.rel target = $region70
              $region75: #{_batch_forward.1} parent=67 // loop_exit
                _
            $region68: #{_batch_forward.1} parent=59 // pred_fallthru
              _
          $region60: #{_batch_forward.1} parent=55 // pred_fallthru
            _
          %410 = vnop
        $region56: #{_batch_forward.1} parent=51 // pred_fallthru
          _
        // Predicated region
        $region94: #{_batch_forward.1} parent=51 // pred_check
          %p411 = pneg %p80
        $region95: #{_batch_forward.1} parent=51 // pred_check_branch
          %413 = sbr.rel (%p411) target = $region97
        $region96: #{_batch_forward.1} parent=51 // pred_region
          %s414 = sand.u32 %s70, 1
          %s415 = sand.u32 %s70, 1
          %s416 = smul.addr %s415, 32
          %s417 = scalar_lea.vmem [#allocation4], %s416
          %s418 = smul.addr %s25, 16
          %s419 = sadd.s32 %s26, %s418
          %s420 = smul.addr %s419, 4
          %s421 = scalar_lea.vmem %s1, %s420
          // Predicated region
          $region98: #{_batch_forward.1} parent=96 // pred_check
            _
          $region99: #{_batch_forward.1} parent=96 // pred_check_branch
            %423 = sbr.rel (0) target = $region101
          $region100: #{_batch_forward.1} parent=96 // pred_region
            // Predicated region
            $region102: #{_batch_forward.1} parent=100 // pred_check
              _
            $region103: #{_batch_forward.1} parent=100 // pred_check_branch
              %425 = sbr.rel target = $region105
            $region104: #{_batch_forward.1} parent=100 // pred_region
              // Predicated region
              $region117: #{_batch_forward.1} parent=104 // pred_check
                _
              $region118: #{_batch_forward.1} parent=104 // pred_check_branch
                %454 = sbr.rel (0) target = $region120
              $region119: #{_batch_forward.1} parent=104 // pred_region
                loop: start=0, step=1, limit=1
                $region121: #{_batch_forward.1} parent=119 // loop_pre_header
                  _
                $region122: #{_batch_forward.1} parent=119 // loop_header
                  %s456 = sphi 0, %s460
                  %p457 = scmp.ge.s32.totalorder %s456, 1
                  %s461 = sphi %s421, %s421
                  %s462 = sphi %s417, %s417
                $region123: #{_batch_forward.1} parent=119 // loop_header_branch
                  %459 = sbr.rel (%p457) target = $region127
                $region124: #{_batch_forward.1} parent=119 // loop_body
                  _
                $region125: #{_batch_forward.1} parent=119 // loop_footer
                  %s460 = sadd.s32 1, %s456
                $region126: #{_batch_forward.1} parent=119 // loop_footer_branch
                  %455 = sbr.rel target = $region122
                $region127: #{_batch_forward.1} parent=119 // loop_exit
                  _
                loop: start=0, step=1, limit=1
                $region128: #{_batch_forward.1} parent=119 // loop_pre_header
                  _
                $region129: #{_batch_forward.1} parent=119 // loop_header
                  %s465 = sphi 0, %s469
                  %p466 = scmp.ge.s32.totalorder %s465, 1
                  %s470 = sphi %s421, %s421
                  %s471 = sphi %s417, %s417
                $region130: #{_batch_forward.1} parent=119 // loop_header_branch
                  %468 = sbr.rel (%p466) target = $region134
                $region131: #{_batch_forward.1} parent=119 // loop_body
                  %v472 = vld [vmem:[%s470] sm:$0xf]
                  %473 = vst [vmem:[%s471] sm:$0xf] %v472
                  %v474 = vld [vmem:[%s470 + $0x8] sm:$0xf]
                  %475 = vst [vmem:[%s471 + $0x4] sm:$0xf] %v474
                  %v476 = vld [vmem:[%s470 + $0x10] sm:$0xf]
                  %477 = vst [vmem:[%s471 + $0x8] sm:$0xf] %v476
                  %v478 = vld [vmem:[%s470 + $0x18] sm:$0xf]
                  %479 = vst [vmem:[%s471 + $0xc] sm:$0xf] %v478
                  %v480 = vld [vmem:[%s470 + $0x20] sm:$0xf]
                  %481 = vst [vmem:[%s471 + $0x10] sm:$0xf] %v480
                  %v482 = vld [vmem:[%s470 + $0x28] sm:$0xf]
                  %483 = vst [vmem:[%s471 + $0x14] sm:$0xf] %v482
                  %v484 = vld [vmem:[%s470 + $0x30] sm:$0xf]
                  %485 = vst [vmem:[%s471 + $0x18] sm:$0xf] %v484
                  %v486 = vld [vmem:[%s470 + $0x38] sm:$0xf]
                  %487 = vst [vmem:[%s471 + $0x1c] sm:$0xf] %v486
                $region132: #{_batch_forward.1} parent=119 // loop_footer
                  %s469 = sadd.s32 1, %s465
                $region133: #{_batch_forward.1} parent=119 // loop_footer_branch
                  %464 = sbr.rel target = $region129
                $region134: #{_batch_forward.1} parent=119 // loop_exit
                  _
              $region120: #{_batch_forward.1} parent=104 // pred_fallthru
                _
            $region105: #{_batch_forward.1} parent=100 // pred_fallthru
              _
            // Predicated region
            $region106: #{_batch_forward.1} parent=100 // pred_check
              _
            $region107: #{_batch_forward.1} parent=100 // pred_check_branch
              %427 = sbr.rel (0) target = $region109
            $region108: #{_batch_forward.1} parent=100 // pred_region
              loop: start=0, step=1, limit=1
              $region110: #{_batch_forward.1} parent=108 // loop_pre_header
                _
              $region111: #{_batch_forward.1} parent=108 // loop_header
                %s430 = sphi 0, %s434
                %p431 = scmp.ge.s32.totalorder %s430, 1
                %s435 = sphi %s421, %s421
                %s436 = sphi %s417, %s417
              $region112: #{_batch_forward.1} parent=108 // loop_header_branch
                %433 = sbr.rel (%p431) target = $region116
              $region113: #{_batch_forward.1} parent=108 // loop_body
                %v437 = vld [vmem:[%s435] sm:$0xf]
                %438 = vst [vmem:[%s436] sm:$0xf] %v437
                %v439 = vld [vmem:[%s435 + $0x8] sm:$0xf]
                %440 = vst [vmem:[%s436 + $0x4] sm:$0xf] %v439
                %v441 = vld [vmem:[%s435 + $0x10] sm:$0xf]
                %442 = vst [vmem:[%s436 + $0x8] sm:$0xf] %v441
                %v443 = vld [vmem:[%s435 + $0x18] sm:$0xf]
                %444 = vst [vmem:[%s436 + $0xc] sm:$0xf] %v443
                %v445 = vld [vmem:[%s435 + $0x20] sm:$0xf]
                %446 = vst [vmem:[%s436 + $0x10] sm:$0xf] %v445
                %v447 = vld [vmem:[%s435 + $0x28] sm:$0xf]
                %448 = vst [vmem:[%s436 + $0x14] sm:$0xf] %v447
                %v449 = vld [vmem:[%s435 + $0x30] sm:$0xf]
                %450 = vst [vmem:[%s436 + $0x18] sm:$0xf] %v449
                %v451 = vld [vmem:[%s435 + $0x38] sm:$0xf]
                %452 = vst [vmem:[%s436 + $0x1c] sm:$0xf] %v451
              $region114: #{_batch_forward.1} parent=108 // loop_footer
                %s434 = sadd.s32 1, %s430
              $region115: #{_batch_forward.1} parent=108 // loop_footer_branch
                %429 = sbr.rel target = $region111
              $region116: #{_batch_forward.1} parent=108 // loop_exit
                _
            $region109: #{_batch_forward.1} parent=100 // pred_fallthru
              _
          $region101: #{_batch_forward.1} parent=96 // pred_fallthru
            _
          %488 = vnop
        $region97: #{_batch_forward.1} parent=51 // pred_fallthru
          _
      $region52: #{_batch_forward.1} parent=5 // pred_fallthru
        _
      %p489 = scmp.le.s32.totalorder 1, %s18
      %p490 = scmp.lt.s32.totalorder %s18, 5
      %p491 = pnand %p489, %p490
      %p492 = pneg %p491
      // Predicated region
      $region135: #{_batch_forward.1} parent=5 // pred_check
        _
      $region136: #{_batch_forward.1} parent=5 // pred_check_branch
        %494 = sbr.rel (%p491) target = $region138
      $region137: #{_batch_forward.1} parent=5 // pred_region
        %s495 = ssub.s32 %s18, 1
        %s496 = sand.u32 %s45, 1
        %s497 = sand.u32 %s45, 1
        %s498 = smul.addr %s497, 16
        %s499 = scalar_lea.vmem [#allocation3], %s498
        // Predicated region
        $region139: #{_batch_forward.1} parent=137 // pred_check
          %p500 = pneg %p58
        $region140: #{_batch_forward.1} parent=137 // pred_check_branch
          %502 = sbr.rel (%p500) target = $region142
        $region141: #{_batch_forward.1} parent=137 // pred_region
          _
        $region142: #{_batch_forward.1} parent=137 // pred_fallthru
          _
        %s503 = sand.u32 %s73, 1
        %s504 = sand.u32 %s73, 1
        %s505 = smul.addr %s504, 32
        %s506 = scalar_lea.vmem [#allocation4], %s505
        // Predicated region
        $region143: #{_batch_forward.1} parent=137 // pred_check
          %p507 = pneg %p86
        $region144: #{_batch_forward.1} parent=137 // pred_check_branch
          %509 = sbr.rel (%p507) target = $region146
        $region145: #{_batch_forward.1} parent=137 // pred_region
          _
        $region146: #{_batch_forward.1} parent=137 // pred_fallthru
          _
        %s510 = sand.u32 %s45, 1
        %s511 = sand.u32 %s45, 1
        %s512 = smul.addr %s511, 16
        %s513 = scalar_lea.vmem [#allocation3], %s512
        %p514 = pneg %p58
        %p515 = pneg %p55
        %s516 = sand.u32 %s73, 1
        %s517 = sand.u32 %s73, 1
        %s518 = smul.addr %s517, 32
        %s519 = scalar_lea.vmem [#allocation4], %s518
        %p520 = pneg %p86
        %p521 = pneg %p83
        %p522 = pneg %p107
        %p523 = pneg %p104
        %p524 = pneg %p128
        %p525 = pneg %p125
        %p526 = pneg %p149
        %p527 = pneg %p146
        %p528 = pneg %p170
        %p529 = pneg %p167
        %p530 = pneg %p191
        %p531 = pneg %p188
        %p532 = pneg %p212
        %p533 = pneg %p209
        %p534 = pneg %p233
        %p535 = pneg %p230
        %p536 = pneg %p254
        %p537 = pneg %p251
        %p538 = pneg %p275
        %p539 = pneg %p272
        %p540 = pneg %p303
        %p541 = pneg %p300
        %s542 = sand.u32 %s290, 1
        %s543 = sand.u32 %s290, 1
        %s544 = smul.addr %s543, 32
        %s545 = scalar_lea.vmem [#allocation5], %s544
        %v547 = vld [vmem:[%s499] sm:$0xf]
        %v548 = vld [vmem:[%s499 + $0x4] sm:$0xf]
        %v549 = vld [vmem:[%s499 + $0x8] sm:$0xf]
        %v550 = vld [vmem:[%s499 + $0xc] sm:$0xf]
        %v551 = vld [vmem:[%s2] sm:$0xf]
        %v552 = vld [vmem:[%s2 + $0x4] sm:$0xf]
        %v553 = vld [vmem:[%s2 + $0x8] sm:$0xf]
        %v554 = vld [vmem:[%s2 + $0xc] sm:$0xf]
        %v555 = vld [vmem:[%s4] sm:$0xff]
        %v556 = vld [vmem:[%s4 + $0x8] sm:$0xff]
        %v557 = vld [vmem:[%s4 + $0x10] sm:$0xff]
        %v558 = vld [vmem:[%s4 + $0x18] sm:$0xff]
        %560 = vset.pattern.permute.xlu0 0
        %561 = vperm.xlu0 %560, %v555
        %v562 = vpop.permute.xlu0 %561
        %565 = vset.pattern.permute.xlu0 0
        %566 = vperm.xlu0 %565, %v556
        %v567 = vpop.permute.xlu0 %566
        %570 = vset.pattern.permute.xlu0 0
        %571 = vperm.xlu0 %570, %v557
        %v572 = vpop.permute.xlu0 %571
        %575 = vset.pattern.permute.xlu0 0
        %576 = vperm.xlu0 %575, %v558
        %v577 = vpop.permute.xlu0 %576
        %v583 = vunpack.c.l.b16 %v551
        %v584 = vunpack.c.l.b16 %v552
        %v585 = vunpack.c.l.b16 %v553
        %v586 = vunpack.c.l.b16 %v554
        %v587 = vpack.c.b16 %v584, %v583
        %v588 = vpack.c.b16 %v586, %v585
        %v593 = vunpack.c.l.b16 %v547
        %v594 = vunpack.c.l.b16 %v548
        %v595 = vunpack.c.l.b16 %v549
        %v596 = vunpack.c.l.b16 %v550
        %v597 = vpack.c.b16 %v594, %v593
        %v598 = vpack.c.b16 %v596, %v595
        %vm601 = vcmask 261120
        %v603 = vsel %vm601, %v587, 0
        %v606 = vsel %vm601, %v588, 0
        %608 = vmatprep.subr.bf16.mxu0 0
        %609 = vmatpush1.bf16.msra.mxu0 %v597
        %610 = vmatprep.subr.bf16.mxu0 0
        %611 = vmatpush1.bf16.msra.mxu0 %v598
        %612 = vmatprep.subr.bf16.mxu0 0
        %613 = vmatpush1.bf16.msra.mxu0 0
        %614 = vmatprep.subr.bf16.mxu0 0
        %615 = vmatpush1.bf16.msra.mxu0 0
        %616 = vmatprep.subr.bf16.mxu0 0
        %617 = vmatpush1.bf16.msra.mxu0 0
        %618 = vmatprep.subr.bf16.mxu0 0
        %619 = vmatpush1.bf16.msra.mxu0 0
        %620 = vmatprep.subr.bf16.mxu0 0
        %621 = vmatpush1.bf16.msra.mxu0 0
        %622 = vmatprep.subr.bf16.mxu0 0
        %623 = vmatpush1.bf16.msra.mxu0 0
        %624 = vmatprep.subr.bf16.mxu0 0
        %625 = vmatpush1.bf16.msra.mxu0 0
        %626 = vmatprep.subr.bf16.mxu0 0
        %627 = vmatpush1.bf16.msra.mxu0 0
        %628 = vmatprep.subr.bf16.mxu0 0
        %629 = vmatpush1.bf16.msra.mxu0 0
        %630 = vmatprep.subr.bf16.mxu0 0
        %631 = vmatpush1.bf16.msra.mxu0 0
        %632 = vmatprep.subr.bf16.mxu0 0
        %633 = vmatpush1.bf16.msra.mxu0 0
        %634 = vmatprep.subr.bf16.mxu0 0
        %635 = vmatpush1.bf16.msra.mxu0 0
        %636 = vmatprep.subr.bf16.mxu0 0
        %637 = vmatpush1.bf16.msra.mxu0 0
        %638 = vmatprep.subr.bf16.mxu0 0
        %639 = vmatpush1.bf16.msra.mxu0 0
        %640 = vmatprep.mubr.bf16.mxu0 0
        %641 = vmatmul.mubr.bf16.gmra.mrb[0].mxu0 %v603
        %v642 = vpop.f32.mrb[0].mxu0
        %v643 = vadd.f32 %v562, %v642
        %v644 = vpop.f32.mrb[0].mxu0
        %v645 = vpop.f32.mrb[0].mxu0
        %v646 = vadd.f32 %v567, %v645
        %v647 = vpop.f32.mrb[0].mxu0
        %648 = vmatprep.mubr.bf16.mxu0 0
        %649 = vmatmul.mubr.bf16.gmra.mrb[0].mxu0 %v606
        %v650 = vpop.f32.mrb[0].mxu0
        %v651 = vadd.f32 %v572, %v650
        %v652 = vpop.f32.mrb[0].mxu0
        %v653 = vpop.f32.mrb[0].mxu0
        %v654 = vadd.f32 %v577, %v653
        %v655 = vpop.f32.mrb[0].mxu0
        %656 = vdwg.mxu0
        %v657 = vld [vmem:[%s9] sm:$0xff]
        %s658 = sld [smem:[#allocation2]]
        %v659 = vld [vmem:[%s506] sm:$0xf]
        %v660 = vld [vmem:[%s506 + $0x4] sm:$0xf]
        %v661 = vld [vmem:[%s506 + $0x8] sm:$0xf]
        %v662 = vld [vmem:[%s506 + $0xc] sm:$0xf]
        %v663 = vld [vmem:[%s3] sm:$0xf]
        %v664 = vld [vmem:[%s3 + $0x4] sm:$0xf]
        %v665 = vld [vmem:[%s3 + $0x8] sm:$0xf]
        %v666 = vld [vmem:[%s3 + $0xc] sm:$0xf]
        %v671 = vunpack.c.l.b16 %v663
        %v672 = vunpack.c.l.b16 %v664
        %v673 = vunpack.c.l.b16 %v665
        %v674 = vunpack.c.l.b16 %v666
        %v675 = vpack.c.b16 %v672, %v671
        %v676 = vpack.c.b16 %v674, %v673
        %v681 = vunpack.c.l.b16 %v659
        %v682 = vunpack.c.l.b16 %v660
        %v683 = vunpack.c.l.b16 %v661
        %v684 = vunpack.c.l.b16 %v662
        %v685 = vpack.c.b16 %v682, %v681
        %v686 = vpack.c.b16 %v684, %v683
        %v690 = vsel %vm601, %v675, 0
        %v693 = vsel %vm601, %v676, 0
        %695 = vmatprep.subr.bf16.mxu0 0
        %696 = vmatpush1.bf16.msra.mxu0 %v685
        %697 = vmatprep.subr.bf16.mxu0 0
        %698 = vmatpush1.bf16.msra.mxu0 %v686
        %699 = vmatprep.subr.bf16.mxu0 0
        %700 = vmatpush1.bf16.msra.mxu0 0
        %701 = vmatprep.subr.bf16.mxu0 0
        %702 = vmatpush1.bf16.msra.mxu0 0
        %703 = vmatprep.subr.bf16.mxu0 0
        %704 = vmatpush1.bf16.msra.mxu0 0
        %705 = vmatprep.subr.bf16.mxu0 0
        %706 = vmatpush1.bf16.msra.mxu0 0
        %707 = vmatprep.subr.bf16.mxu0 0
        %708 = vmatpush1.bf16.msra.mxu0 0
        %709 = vmatprep.subr.bf16.mxu0 0
        %710 = vmatpush1.bf16.msra.mxu0 0
        %711 = vmatprep.subr.bf16.mxu0 0
        %712 = vmatpush1.bf16.msra.mxu0 0
        %713 = vmatprep.subr.bf16.mxu0 0
        %714 = vmatpush1.bf16.msra.mxu0 0
        %715 = vmatprep.subr.bf16.mxu0 0
        %716 = vmatpush1.bf16.msra.mxu0 0
        %717 = vmatprep.subr.bf16.mxu0 0
        %718 = vmatpush1.bf16.msra.mxu0 0
        %719 = vmatprep.subr.bf16.mxu0 0
        %720 = vmatpush1.bf16.msra.mxu0 0
        %721 = vmatprep.subr.bf16.mxu0 0
        %722 = vmatpush1.bf16.msra.mxu0 0
        %723 = vmatprep.subr.bf16.mxu0 0
        %724 = vmatpush1.bf16.msra.mxu0 0
        %725 = vmatprep.subr.bf16.mxu0 0
        %726 = vmatpush1.bf16.msra.mxu0 0
        %727 = vmatprep.mubr.bf16.mxu0 0
        %728 = vmatmul.mubr.bf16.gmra.mrb[0].mxu0 %v690
        %v729 = vpop.f32.mrb[0].mxu0
        %v730 = vadd.f32 %v643, %v729
        %v731 = vpop.f32.mrb[0].mxu0
        %v732 = vpop.f32.mrb[0].mxu0
        %v733 = vadd.f32 %v646, %v732
        %v734 = vpop.f32.mrb[0].mxu0
        %735 = vmatprep.mubr.bf16.mxu0 0
        %736 = vmatmul.mubr.bf16.gmra.mrb[0].mxu0 %v693
        %v737 = vpop.f32.mrb[0].mxu0
        %v738 = vadd.f32 %v651, %v737
        %v739 = vpop.f32.mrb[0].mxu0
        %v740 = vpop.f32.mrb[0].mxu0
        %v741 = vadd.f32 %v654, %v740
        %v742 = vpop.f32.mrb[0].mxu0
        %743 = vdwg.mxu0
        %v744 = vmax.f32 %v730, 0.0
        %v745 = vmax.f32 %v733, 0.0
        %v746 = vmax.f32 %v738, 0.0
        %v747 = vmax.f32 %v741, 0.0
        %v748 = vpack.c.bf16 %v745, %v744
        %v749 = vpack.c.bf16 %v747, %v746
        %v750 = vld [vmem:[%s5] sm:$0xf]
        %v751 = vld [vmem:[%s5 + $0x4] sm:$0xf]
        %v752 = vld [vmem:[%s6] sm:$0xff]
        %v753 = vld [vmem:[%s6 + $0x8] sm:$0xff]
        %755 = vset.pattern.permute.xlu0 0
        %756 = vperm.xlu0 %755, %v752
        %v757 = vpop.permute.xlu0 %756
        %760 = vset.pattern.permute.xlu0 0
        %761 = vperm.xlu0 %760, %v753
        %v762 = vpop.permute.xlu0 %761
        %v766 = vunpack.c.l.b16 %v750
        %v767 = vunpack.c.l.b16 %v751
        %v768 = vpack.c.b16 %v767, %v766
        %v770 = vsel %vm601, %v768, 0
        %772 = vmatprep.subr.bf16.mxu0 0
        %773 = vmatpush1.bf16.msra.mxu0 %v748
        %774 = vmatprep.subr.bf16.mxu0 0
        %775 = vmatpush1.bf16.msra.mxu0 %v749
        %776 = vmatprep.subr.bf16.mxu0 0
        %777 = vmatpush1.bf16.msra.mxu0 0
        %778 = vmatprep.subr.bf16.mxu0 0
        %779 = vmatpush1.bf16.msra.mxu0 0
        %780 = vmatprep.subr.bf16.mxu0 0
        %781 = vmatpush1.bf16.msra.mxu0 0
        %782 = vmatprep.subr.bf16.mxu0 0
        %783 = vmatpush1.bf16.msra.mxu0 0
        %784 = vmatprep.subr.bf16.mxu0 0
        %785 = vmatpush1.bf16.msra.mxu0 0
        %786 = vmatprep.subr.bf16.mxu0 0
        %787 = vmatpush1.bf16.msra.mxu0 0
        %788 = vmatprep.subr.bf16.mxu0 0
        %789 = vmatpush1.bf16.msra.mxu0 0
        %790 = vmatprep.subr.bf16.mxu0 0
        %791 = vmatpush1.bf16.msra.mxu0 0
        %792 = vmatprep.subr.bf16.mxu0 0
        %793 = vmatpush1.bf16.msra.mxu0 0
        %794 = vmatprep.subr.bf16.mxu0 0
        %795 = vmatpush1.bf16.msra.mxu0 0
        %796 = vmatprep.subr.bf16.mxu0 0
        %797 = vmatpush1.bf16.msra.mxu0 0
        %798 = vmatprep.subr.bf16.mxu0 0
        %799 = vmatpush1.bf16.msra.mxu0 0
        %800 = vmatprep.subr.bf16.mxu0 0
        %801 = vmatpush1.bf16.msra.mxu0 0
        %802 = vmatprep.subr.bf16.mxu0 0
        %803 = vmatpush1.bf16.msra.mxu0 0
        %804 = vmatprep.mubr.bf16.mxu0 0
        %805 = vmatmul.mubr.bf16.gmra.mrb[0].mxu0 %v770
        %v806 = vpop.f32.mrb[0].mxu0
        %v807 = vadd.f32 %v757, %v806
        %v808 = vpop.f32.mrb[0].mxu0
        %v809 = vpop.f32.mrb[0].mxu0
        %v810 = vadd.f32 %v762, %v809
        %v811 = vpop.f32.mrb[0].mxu0
        %812 = vdwg.mxu0
        %v813 = vmax.f32 %v807, 0.0
        %v814 = vmax.f32 %v810, 0.0
        %v815 = vpack.c.bf16 %v814, %v813
        %v816 = vld [vmem:[%s7] sm:$0xf]
        %v817 = vld [vmem:[%s8] sm:$0xff]
        %819 = vset.pattern.permute.xlu0 0
        %820 = vperm.xlu0 %819, %v817
        %v821 = vpop.permute.xlu0 %820
        %vm823 = vcmask 130048
        %v825 = vsel %vm823, %v816, 0
        %827 = vmatprep.subr.bf16.mxu0 0
        %828 = vmatpush1.bf16.msra.mxu0 %v815
        %829 = vmatprep.subr.bf16.mxu0 0
        %830 = vmatpush1.bf16.msra.mxu0 0
        %831 = vmatprep.subr.bf16.mxu0 0
        %832 = vmatpush1.bf16.msra.mxu0 0
        %833 = vmatprep.subr.bf16.mxu0 0
        %834 = vmatpush1.bf16.msra.mxu0 0
        %835 = vmatprep.subr.bf16.mxu0 0
        %836 = vmatpush1.bf16.msra.mxu0 0
        %837 = vmatprep.subr.bf16.mxu0 0
        %838 = vmatpush1.bf16.msra.mxu0 0
        %839 = vmatprep.subr.bf16.mxu0 0
        %840 = vmatpush1.bf16.msra.mxu0 0
        %841 = vmatprep.subr.bf16.mxu0 0
        %842 = vmatpush1.bf16.msra.mxu0 0
        %843 = vmatprep.subr.bf16.mxu0 0
        %844 = vmatpush1.bf16.msra.mxu0 0
        %845 = vmatprep.subr.bf16.mxu0 0
        %846 = vmatpush1.bf16.msra.mxu0 0
        %847 = vmatprep.subr.bf16.mxu0 0
        %848 = vmatpush1.bf16.msra.mxu0 0
        %849 = vmatprep.subr.bf16.mxu0 0
        %850 = vmatpush1.bf16.msra.mxu0 0
        %851 = vmatprep.subr.bf16.mxu0 0
        %852 = vmatpush1.bf16.msra.mxu0 0
        %853 = vmatprep.subr.bf16.mxu0 0
        %854 = vmatpush1.bf16.msra.mxu0 0
        %855 = vmatprep.subr.bf16.mxu0 0
        %856 = vmatpush1.bf16.msra.mxu0 0
        %857 = vmatprep.subr.bf16.mxu0 0
        %858 = vmatpush1.bf16.msra.mxu0 0
        %859 = vmatprep.mubr.bf16.mxu0 0
        %860 = vmatmul.mubr.bf16.gmra.mrb[0].mxu0 %v825
        %v861 = vpop.f32.mrb[0].mxu0
        %v862 = vadd.f32 %v821, %v861
        %v863 = vpop.f32.mrb[0].mxu0
        %v864 = vpop.f32.mrb[0].mxu0
        %v865 = vpop.f32.mrb[0].mxu0
        %866 = vdwg.mxu0
        %v867 = vmax.f32 %v862, 0.0
        %869 = vset.pattern.permute.xlu0 0
        %870 = vperm.xlu0 %869, %v657
        %v871 = vpop.permute.xlu0 %870
        %v873 = vmul.f32 %v871, %v867
        %v874 = vrot.slane %v873, 4
        %v875 = vadd.f32 %v873, %v874
        %v876 = vrot.slane %v875, 2
        %v877 = vadd.f32 %v875, %v876
        %v878 = vrot.slane %v877, 1
        %v879 = vadd.f32 %v877, %v878
        %v880 = vstv %s658
        %v881 = vadd.f32 %v879, %v880
        %v882 = vmax.f32 %v881, 0.0
        %s883 = scalar_lea.vmem %s506, 16 [#allocation4]
        %v884 = vld [vmem:[%s883] sm:$0xf]
        %v885 = vld [vmem:[%s883 + $0x4] sm:$0xf]
        %v886 = vld [vmem:[%s883 + $0x8] sm:$0xf]
        %v887 = vld [vmem:[%s883 + $0xc] sm:$0xf]
        %v892 = vunpack.c.l.b16 %v884
        %v893 = vunpack.c.l.b16 %v885
        %v894 = vunpack.c.l.b16 %v886
        %v895 = vunpack.c.l.b16 %v887
        %v896 = vpack.c.b16 %v893, %v892
        %v897 = vpack.c.b16 %v895, %v894
        %900 = vmatprep.subr.bf16.mxu0 0
        %901 = vmatpush1.bf16.msra.mxu0 %v896
        %902 = vmatprep.subr.bf16.mxu0 0
        %903 = vmatpush1.bf16.msra.mxu0 %v897
        %904 = vmatprep.subr.bf16.mxu0 0
        %905 = vmatpush1.bf16.msra.mxu0 0
        %906 = vmatprep.subr.bf16.mxu0 0
        %907 = vmatpush1.bf16.msra.mxu0 0
        %908 = vmatprep.subr.bf16.mxu0 0
        %909 = vmatpush1.bf16.msra.mxu0 0
        %910 = vmatprep.subr.bf16.mxu0 0
        %911 = vmatpush1.bf16.msra.mxu0 0
        %912 = vmatprep.subr.bf16.mxu0 0
        %913 = vmatpush1.bf16.msra.mxu0 0
        %914 = vmatprep.subr.bf16.mxu0 0
        %915 = vmatpush1.bf16.msra.mxu0 0
        %916 = vmatprep.subr.bf16.mxu0 0
        %917 = vmatpush1.bf16.msra.mxu0 0
        %918 = vmatprep.subr.bf16.mxu0 0
        %919 = vmatpush1.bf16.msra.mxu0 0
        %920 = vmatprep.subr.bf16.mxu0 0
        %921 = vmatpush1.bf16.msra.mxu0 0
        %922 = vmatprep.subr.bf16.mxu0 0
        %923 = vmatpush1.bf16.msra.mxu0 0
        %924 = vmatprep.subr.bf16.mxu0 0
        %925 = vmatpush1.bf16.msra.mxu0 0
        %926 = vmatprep.subr.bf16.mxu0 0
        %927 = vmatpush1.bf16.msra.mxu0 0
        %928 = vmatprep.subr.bf16.mxu0 0
        %929 = vmatpush1.bf16.msra.mxu0 0
        %930 = vmatprep.subr.bf16.mxu0 0
        %931 = vmatpush1.bf16.msra.mxu0 0
        %932 = vmatprep.mubr.bf16.mxu0 0
        %933 = vmatmul.mubr.bf16.gmra.mrb[0].mxu0 %v690
        %v934 = vpop.f32.mrb[0].mxu0
        %v935 = vadd.f32 %v643, %v934
        %v936 = vpop.f32.mrb[0].mxu0
        %v937 = vpop.f32.mrb[0].mxu0
        %v938 = vadd.f32 %v646, %v937
        %v939 = vpop.f32.mrb[0].mxu0
        %940 = vmatprep.mubr.bf16.mxu0 0
        %941 = vmatmul.mubr.bf16.gmra.mrb[0].mxu0 %v693
        %v942 = vpop.f32.mrb[0].mxu0
        %v943 = vadd.f32 %v651, %v942
        %v944 = vpop.f32.mrb[0].mxu0
        %v945 = vpop.f32.mrb[0].mxu0
        %v946 = vadd.f32 %v654, %v945
        %v947 = vpop.f32.mrb[0].mxu0
        %948 = vdwg.mxu0
        %v949 = vmax.f32 %v935, 0.0
        %v950 = vmax.f32 %v938, 0.0
        %v951 = vmax.f32 %v943, 0.0
        %v952 = vmax.f32 %v946, 0.0
        %v953 = vpack.c.bf16 %v950, %v949
        %v954 = vpack.c.bf16 %v952, %v951
        %955 = vmatprep.subr.bf16.mxu0 0
        %956 = vmatpush1.bf16.msra.mxu0 %v953
        %957 = vmatprep.subr.bf16.mxu0 0
        %958 = vmatpush1.bf16.msra.mxu0 %v954
        %959 = vmatprep.subr.bf16.mxu0 0
        %960 = vmatpush1.bf16.msra.mxu0 0
        %961 = vmatprep.subr.bf16.mxu0 0
        %962 = vmatpush1.bf16.msra.mxu0 0
        %963 = vmatprep.subr.bf16.mxu0 0
        %964 = vmatpush1.bf16.msra.mxu0 0
        %965 = vmatprep.subr.bf16.mxu0 0
        %966 = vmatpush1.bf16.msra.mxu0 0
        %967 = vmatprep.subr.bf16.mxu0 0
        %968 = vmatpush1.bf16.msra.mxu0 0
        %969 = vmatprep.subr.bf16.mxu0 0
        %970 = vmatpush1.bf16.msra.mxu0 0
        %971 = vmatprep.subr.bf16.mxu0 0
        %972 = vmatpush1.bf16.msra.mxu0 0
        %973 = vmatprep.subr.bf16.mxu0 0
        %974 = vmatpush1.bf16.msra.mxu0 0
        %975 = vmatprep.subr.bf16.mxu0 0
        %976 = vmatpush1.bf16.msra.mxu0 0
        %977 = vmatprep.subr.bf16.mxu0 0
        %978 = vmatpush1.bf16.msra.mxu0 0
        %979 = vmatprep.subr.bf16.mxu0 0
        %980 = vmatpush1.bf16.msra.mxu0 0
        %981 = vmatprep.subr.bf16.mxu0 0
        %982 = vmatpush1.bf16.msra.mxu0 0
        %983 = vmatprep.subr.bf16.mxu0 0
        %984 = vmatpush1.bf16.msra.mxu0 0
        %985 = vmatprep.subr.bf16.mxu0 0
        %986 = vmatpush1.bf16.msra.mxu0 0
        %987 = vmatprep.mubr.bf16.mxu0 0
        %988 = vmatmul.mubr.bf16.gmra.mrb[0].mxu0 %v770
        %v989 = vpop.f32.mrb[0].mxu0
        %v990 = vadd.f32 %v757, %v989
        %v991 = vpop.f32.mrb[0].mxu0
        %v992 = vpop.f32.mrb[0].mxu0
        %v993 = vadd.f32 %v762, %v992
        %v994 = vpop.f32.mrb[0].mxu0
        %995 = vdwg.mxu0
        %v996 = vmax.f32 %v990, 0.0
        %v997 = vmax.f32 %v993, 0.0
        %v998 = vpack.c.bf16 %v997, %v996
        %999 = vmatprep.subr.bf16.mxu0 0
        %1000 = vmatpush1.bf16.msra.mxu0 %v998
        %1001 = vmatprep.subr.bf16.mxu0 0
        %1002 = vmatpush1.bf16.msra.mxu0 0
        %1003 = vmatprep.subr.bf16.mxu0 0
        %1004 = vmatpush1.bf16.msra.mxu0 0
        %1005 = vmatprep.subr.bf16.mxu0 0
        %1006 = vmatpush1.bf16.msra.mxu0 0
        %1007 = vmatprep.subr.bf16.mxu0 0
        %1008 = vmatpush1.bf16.msra.mxu0 0
        %1009 = vmatprep.subr.bf16.mxu0 0
        %1010 = vmatpush1.bf16.msra.mxu0 0
        %1011 = vmatprep.subr.bf16.mxu0 0
        %1012 = vmatpush1.bf16.msra.mxu0 0
        %1013 = vmatprep.subr.bf16.mxu0 0
        %1014 = vmatpush1.bf16.msra.mxu0 0
        %1015 = vmatprep.subr.bf16.mxu0 0
        %1016 = vmatpush1.bf16.msra.mxu0 0
        %1017 = vmatprep.subr.bf16.mxu0 0
        %1018 = vmatpush1.bf16.msra.mxu0 0
        %1019 = vmatprep.subr.bf16.mxu0 0
        %1020 = vmatpush1.bf16.msra.mxu0 0
        %1021 = vmatprep.subr.bf16.mxu0 0
        %1022 = vmatpush1.bf16.msra.mxu0 0
        %1023 = vmatprep.subr.bf16.mxu0 0
        %1024 = vmatpush1.bf16.msra.mxu0 0
        %1025 = vmatprep.subr.bf16.mxu0 0
        %1026 = vmatpush1.bf16.msra.mxu0 0
        %1027 = vmatprep.subr.bf16.mxu0 0
        %1028 = vmatpush1.bf16.msra.mxu0 0
        %1029 = vmatprep.subr.bf16.mxu0 0
        %1030 = vmatpush1.bf16.msra.mxu0 0
        %1031 = vmatprep.mubr.bf16.mxu0 0
        %1032 = vmatmul.mubr.bf16.gmra.mrb[0].mxu0 %v825
        %v1033 = vpop.f32.mrb[0].mxu0
        %v1034 = vadd.f32 %v821, %v1033
        %v1035 = vpop.f32.mrb[0].mxu0
        %v1036 = vpop.f32.mrb[0].mxu0
        %v1037 = vpop.f32.mrb[0].mxu0
        %1038 = vdwg.mxu0
        %v1039 = vmax.f32 %v1034, 0.0
        %v1040 = vmul.f32 %v871, %v1039
        %v1041 = vrot.slane %v1040, 4
        %v1042 = vadd.f32 %v1040, %v1041
        %v1043 = vrot.slane %v1042, 2
        %v1044 = vadd.f32 %v1042, %v1043
        %v1045 = vrot.slane %v1044, 1
        %v1046 = vadd.f32 %v1044, %v1045
        %v1047 = vadd.f32 %v1046, %v880
        %v1048 = vmax.f32 %v1047, 0.0
        %v1049 = vmax.f32 %v882, %v1048
        %v1050 = vsub.f32 %v882, %v1049
        %v1051 = vmul.f32 %v1050, 1.442695
        %v1052 = vpow.pop %v1051
        %v1053 = vsub.f32 %v1048, %v1049
        %v1054 = vmul.f32 %v1053, 1.442695
        %v1055 = vpow.pop %v1054
        %v1056 = vadd.f32 %v1052, %v1055
        %v1057 = vrcp.pop %v1056
        %v1058 = vmul.f32 %v1052, %v1057
        %v1059 = vunpack.c.l.bf16 %v659
        %v1060 = vunpack.c.l.bf16 %v660
        %v1061 = vunpack.c.l.bf16 %v661
        %v1062 = vunpack.c.l.bf16 %v662
        %v1063 = vmul.f32 %v1058, %v1059
        %v1064 = vmul.f32 %v1058, %v1060
        %v1065 = vmul.f32 %v1058, %v1061
        %v1066 = vmul.f32 %v1058, %v1062
        %v1067 = vmul.f32 %v1055, %v1057
        %v1068 = vunpack.c.l.bf16 %v884
        %v1069 = vunpack.c.l.bf16 %v885
        %v1070 = vunpack.c.l.bf16 %v886
        %v1071 = vunpack.c.l.bf16 %v887
        %v1072 = vmul.f32 %v1067, %v1068
        %v1073 = vmul.f32 %v1067, %v1069
        %v1074 = vmul.f32 %v1067, %v1070
        %v1075 = vmul.f32 %v1067, %v1071
        %v1076 = vadd.f32 %v1063, %v1072
        %v1077 = vadd.f32 %v1064, %v1073
        %v1078 = vadd.f32 %v1065, %v1074
        %v1079 = vadd.f32 %v1066, %v1075
        %1080 = vst [vmem:[%s545] sm:$0xff] %v1076
        %1081 = vst [vmem:[%s545 + $0x8] sm:$0xff] %v1077
        %1082 = vst [vmem:[%s545 + $0x10] sm:$0xff] %v1078
        %1083 = vst [vmem:[%s545 + $0x18] sm:$0xff] %v1079
        %s1084 = sand.u32 %s290, 1
        %s1085 = sand.u32 %s290, 1
        %s1086 = smul.addr %s1085, 32
        %s1087 = scalar_lea.vmem [#allocation5], %s1086
        // Predicated region
        $region147: #{_batch_forward.1} parent=137 // pred_check
          %p1088 = pneg %p300
        $region148: #{_batch_forward.1} parent=137 // pred_check_branch
          %1090 = sbr.rel (%p1088) target = $region150
        $region149: #{_batch_forward.1} parent=137 // pred_region
          %s1091 = smul.addr %s27, 8
          %s1092 = sadd.s32 %s28, %s1091
          %s1093 = smul.addr %s1092, 8
          %s1094 = scalar_lea.vmem %s11, %s1093
          // Predicated region
          $region151: #{_batch_forward.1} parent=149 // pred_check
            _
          $region152: #{_batch_forward.1} parent=149 // pred_check_branch
            %1096 = sbr.rel (0) target = $region154
          $region153: #{_batch_forward.1} parent=149 // pred_region
            // Predicated region
            $region155: #{_batch_forward.1} parent=153 // pred_check
              _
            $region156: #{_batch_forward.1} parent=153 // pred_check_branch
              %1098 = sbr.rel (0) target = $region158
            $region157: #{_batch_forward.1} parent=153 // pred_region
              // Predicated region
              $region170: #{_batch_forward.1} parent=157 // pred_check
                _
              $region171: #{_batch_forward.1} parent=157 // pred_check_branch
                %1119 = sbr.rel (0) target = $region173
              $region172: #{_batch_forward.1} parent=157 // pred_region
                loop: start=0, step=1, limit=1
                $region174: #{_batch_forward.1} parent=172 // loop_pre_header
                  _
                $region175: #{_batch_forward.1} parent=172 // loop_header
                  %s1121 = sphi 0, %s1125
                  %p1122 = scmp.ge.s32.totalorder %s1121, 1
                  %s1126 = sphi %s1087, %s1087
                  %s1127 = sphi %s1094, %s1094
                $region176: #{_batch_forward.1} parent=172 // loop_header_branch
                  %1124 = sbr.rel (%p1122) target = $region180
                $region177: #{_batch_forward.1} parent=172 // loop_body
                  %v1128 = vld [vmem:[%s1126] sm:$0xff]
                  %1129 = vst [vmem:[%s1127] sm:$0xff] %v1128
                  %v1130 = vld [vmem:[%s1126 + $0x8] sm:$0xff]
                  %1131 = vst [vmem:[%s1127 + $0x10] sm:$0xff] %v1130
                  %v1132 = vld [vmem:[%s1126 + $0x10] sm:$0xff]
                  %1133 = vst [vmem:[%s1127 + $0x20] sm:$0xff] %v1132
                  %v1134 = vld [vmem:[%s1126 + $0x18] sm:$0xff]
                  %1135 = vst [vmem:[%s1127 + $0x30] sm:$0xff] %v1134
                $region178: #{_batch_forward.1} parent=172 // loop_footer
                  %s1125 = sadd.s32 1, %s1121
                $region179: #{_batch_forward.1} parent=172 // loop_footer_branch
                  %1120 = sbr.rel target = $region175
                $region180: #{_batch_forward.1} parent=172 // loop_exit
                  _
              $region173: #{_batch_forward.1} parent=157 // pred_fallthru
                _
              // Predicated region
              $region181: #{_batch_forward.1} parent=157 // pred_check
                _
              $region182: #{_batch_forward.1} parent=157 // pred_check_branch
                %1137 = sbr.rel target = $region184
              $region183: #{_batch_forward.1} parent=157 // pred_region
                _
              $region184: #{_batch_forward.1} parent=157 // pred_fallthru
                _
            $region158: #{_batch_forward.1} parent=153 // pred_fallthru
              _
            // Predicated region
            $region159: #{_batch_forward.1} parent=153 // pred_check
              _
            $region160: #{_batch_forward.1} parent=153 // pred_check_branch
              %1100 = sbr.rel target = $region162
            $region161: #{_batch_forward.1} parent=153 // pred_region
              loop: start=0, step=1, limit=1
              $region163: #{_batch_forward.1} parent=161 // loop_pre_header
                _
              $region164: #{_batch_forward.1} parent=161 // loop_header
                %s1103 = sphi 0, %s1107
                %p1104 = scmp.ge.s32.totalorder %s1103, 1
                %s1108 = sphi %s1087, %s1087
                %s1109 = sphi %s1094, %s1094
              $region165: #{_batch_forward.1} parent=161 // loop_header_branch
                %1106 = sbr.rel (%p1104) target = $region169
              $region166: #{_batch_forward.1} parent=161 // loop_body
                %v1110 = vld [vmem:[%s1108] sm:$0xff]
                %1111 = vst [vmem:[%s1109] sm:$0xff] %v1110
                %v1112 = vld [vmem:[%s1108 + $0x8] sm:$0xff]
                %1113 = vst [vmem:[%s1109 + $0x10] sm:$0xff] %v1112
                %v1114 = vld [vmem:[%s1108 + $0x10] sm:$0xff]
                %1115 = vst [vmem:[%s1109 + $0x20] sm:$0xff] %v1114
                %v1116 = vld [vmem:[%s1108 + $0x18] sm:$0xff]
                %1117 = vst [vmem:[%s1109 + $0x30] sm:$0xff] %v1116
              $region167: #{_batch_forward.1} parent=161 // loop_footer
                %s1107 = sadd.s32 1, %s1103
              $region168: #{_batch_forward.1} parent=161 // loop_footer_branch
                %1102 = sbr.rel target = $region164
              $region169: #{_batch_forward.1} parent=161 // loop_exit
                _
            $region162: #{_batch_forward.1} parent=153 // pred_fallthru
              _
          $region154: #{_batch_forward.1} parent=149 // pred_fallthru
            _
          %1138 = vnop
        $region150: #{_batch_forward.1} parent=137 // pred_fallthru
          _
      $region138: #{_batch_forward.1} parent=5 // pred_fallthru
        _
      %p1139 = scmp.le.s32.totalorder 2, %s18
      // Predicated region
      $region185: #{_batch_forward.1} parent=5 // pred_check
        %p1140 = pneg %p1139
      $region186: #{_batch_forward.1} parent=5 // pred_check_branch
        %1142 = sbr.rel (%p1140) target = $region188
      $region187: #{_batch_forward.1} parent=5 // pred_region
        %s1143 = ssub.s32 %s18, 2
        // Predicated region
        $region189: #{_batch_forward.1} parent=187 // pred_check
          %p1144 = pneg %p306
        $region190: #{_batch_forward.1} parent=187 // pred_check_branch
          %1146 = sbr.rel (%p1144) target = $region192
        $region191: #{_batch_forward.1} parent=187 // pred_region
          %s1147 = sand.u32 %s291, 1
          %s1148 = sand.u32 %s291, 1
          %s1149 = smul.addr %s1148, 32
          %s1150 = scalar_lea.vmem [#allocation5], %s1149
        $region192: #{_batch_forward.1} parent=187 // pred_fallthru
          _
      $region188: #{_batch_forward.1} parent=5 // pred_fallthru
        _
    $region6: #{_batch_forward.1} parent=1 // loop_footer
      %s22 = sadd.s32 1, %s18
    $region7: #{_batch_forward.1} parent=1 // loop_footer_branch
      %17 = sbr.rel target = $region3
    $region8: #{_batch_forward.1} parent=1 // loop_exit
      _

</llo_original>
